<compile_context>
chip_gen: v6e
topology: v6e:2x2x1
jax: 0.10.0
libtpu: 0.0.40
codegen_flags: <defaults>
</compile_context>

<pallas_src>
import functools

import jax
import jax.numpy as jnp
from jax.experimental import pallas as pl
from jax.experimental.pallas import tpu as pltpu


def _leaky_relu(h, slope=0.2):
    return jnp.where(h > 0, h, slope * h)


def vae_kernel(
    x_ref, eps_ref,
    w1t_ref, b1_ref, w2t_ref, b2_ref,                       # encoder (transposed)
    wmvt_ref, bmv_ref,                                       # fused mean|log_var head (4, latent)
    wd1t_ref, bd1_ref, wd2t_ref, bd2_ref, wd3t_ref, bd3_ref,  # decoder (transposed)
    out_ref, mv_ref,
):
    x = x_ref[...]                                           # (input_dim, Bt)  lane axis = batch

    # ---- encoder: Linear -> LeakyReLU(0.2) -> Linear -> LeakyReLU(0.2)
    h = _leaky_relu(
        jnp.dot(w1t_ref[...], x, preferred_element_type=jnp.float32) + b1_ref[...]
    )                                                        # (hidden, Bt)
    h = _leaky_relu(
        jnp.dot(w2t_ref[...], h, preferred_element_type=jnp.float32) + b2_ref[...]
    )                                                        # (latent, Bt)

    # ---- fused mean / log_var head: one matmul, rows [0:2]=mean, [2:4]=log_var
    mv = jnp.dot(wmvt_ref[...], h, preferred_element_type=jnp.float32) + bmv_ref[...]  # (4, Bt)
    mean = mv[0:2, :]
    log_var = mv[2:4, :]

    # ---- reparameterization (module uses log_var directly as "var")
    z = mean + log_var * eps_ref[...]                        # (2, Bt)

    # ---- decoder first layer: K=2 contraction as two lane-dense VPU broadcast FMAs
    #      (a depth-2 MXU pass would be almost pure overhead).
    d = (wd1t_ref[:, 0:1] * z[0:1, :]
         + wd1t_ref[:, 1:2] * z[1:2, :]
         + bd1_ref[...])                                     # (latent, Bt)
    d = _leaky_relu(d)

    # ---- remaining decoder: Linear -> LeakyReLU -> Linear -> Sigmoid
    d = _leaky_relu(
        jnp.dot(wd2t_ref[...], d, preferred_element_type=jnp.float32) + bd2_ref[...]
    )                                                        # (hidden, Bt)
    logits = jnp.dot(wd3t_ref[...], d, preferred_element_type=jnp.float32) + bd3_ref[...]

    out_ref[...] = jax.nn.sigmoid(logits)                    # (input_dim, Bt)  unmasked store
    mv_ref[...] = mv                                         # (4, Bt)          unmasked store


def _grid_steps_for_device(batch):
    """1 grid step on single-TC chips (v5e/v6e); exactly 2 on dual-TC v7x."""
    steps = 1
    try:
        kind = jax.devices()[0].device_kind.lower()
        if "7" in kind:                       # v7x: 2 TensorCores per chip
            steps = 2
    except Exception:
        steps = 1
    # Tile must keep the lane (batch) axis a multiple of 128 when split.
    if steps > 1 and (batch % steps != 0 or (batch // steps) % 128 != 0):
        steps = 1
    return steps


@functools.partial(jax.jit, static_argnames=("grid_steps",))
def _vae_forward_impl(x, eps, params, *, grid_steps):
    B, input_dim = x.shape
    (w1, b1, w2, b2, wm, bm, wv, bv, wd1, bd1, wd2, bd2, wd3, bd3) = params
    hidden_dim = w1.shape[1]
    latent_dim = w2.shape[1]

    # Feature-major layout: lane axis = batch for every activation / output.
    x_t = x.T                                  # (input_dim, B)
    eps_t = eps.T                              # (2, B)
    w1t, b1t = w1.T, b1.T                      # (hidden, input), (hidden, 1)
    w2t, b2t = w2.T, b2.T                      # (latent, hidden), (latent, 1)
    wmvt = jnp.concatenate([wm, wv], axis=1).T  # (4, latent)
    bmvt = jnp.concatenate([bm, bv], axis=1).T  # (4, 1)
    wd1t, bd1t = wd1.T, bd1.T                  # (latent, 2), (latent, 1)
    wd2t, bd2t = wd2.T, bd2.T                  # (hidden, latent), (hidden, 1)
    wd3t, bd3t = wd3.T, bd3.T                  # (input, hidden), (input, 1)

    weights = (w1t, b1t, w2t, b2t, wmvt, bmvt, wd1t, bd1t, wd2t, bd2t, wd3t, bd3t)

    bt = B // grid_steps
    grid = (grid_steps,)

    def batch_spec(rows):
        # batch (lane) axis tiled across the grid
        return pl.BlockSpec((rows, bt), lambda i: (0, i))

    def invariant_spec(arr):
        # whole-array, grid-invariant VMEM resident (never re-DMA'd per step)
        return pl.BlockSpec(arr.shape, lambda i: (0, 0))

    in_specs = ([batch_spec(input_dim), batch_spec(2)]
                + [invariant_spec(w) for w in weights])
    out_specs = [batch_spec(input_dim), batch_spec(4)]
    out_shape = [
        jax.ShapeDtypeStruct((input_dim, B), jnp.float32),
        jax.ShapeDtypeStruct((4, B), jnp.float32),
    ]

    # Advisory cost for XLA's scheduler around the custom call.
    macs = (input_dim * hidden_dim + hidden_dim * latent_dim + latent_dim * 4
            + 2 * latent_dim + latent_dim * hidden_dim + hidden_dim * input_dim)
    weight_bytes = sum(int(w.size) for w in weights) * 4
    io_bytes = (int(x.size) + int(eps.size) + B * input_dim + B * 4) * 4

    recon_t, mv_t = pl.pallas_call(
        vae_kernel,
        out_shape=out_shape,
        grid_spec=pltpu.PrefetchScalarGridSpec(
            num_scalar_prefetch=0,
            grid=grid,
            in_specs=in_specs,
            out_specs=out_specs,
        ),
        compiler_params=pltpu.CompilerParams(
            # With 2 steps (v7x) the batch axis shards across both TensorCores;
            # with 1 step this is a no-op.
            dimension_semantics=("parallel",),
        ),
        cost_estimate=pl.CostEstimate(
            flops=2 * B * macs,
            transcendentals=B * input_dim,
            bytes_accessed=weight_bytes + io_bytes,
        ),
    )(x_t, eps_t, *weights)

    recon = recon_t.T
    mean = mv_t[0:2, :].T
    log_var = mv_t[2:4, :].T
    return recon, mean, log_var


def vae_forward(x, eps, params):
    """Runs the fused VAE forward. Returns (reconstruction, mean, log_var)."""
    steps = _grid_steps_for_device(x.shape[0])
    return _vae_forward_impl(x, eps, params, grid_steps=steps)


def init_params(key, input_dim, hidden_dim, latent_dim):
    """Deterministic synthetic parameter init (shapes match the torch module)."""
    def linear(key, fan_in, fan_out):
        k_w, k_b = jax.random.split(key)
        bound = 1.0 / jnp.sqrt(fan_in)
        w = jax.random.uniform(k_w, (fan_in, fan_out), jnp.float32, -bound, bound)
        b = jax.random.uniform(k_b, (1, fan_out), jnp.float32, -bound, bound)
        return w, b

    keys = jax.random.split(key, 7)
    w1, b1 = linear(keys[0], input_dim, hidden_dim)      # encoder[0]
    w2, b2 = linear(keys[1], hidden_dim, latent_dim)     # encoder[2]
    wm, bm = linear(keys[2], latent_dim, 2)              # mean_layer
    wv, bv = linear(keys[3], latent_dim, 2)              # log_var_layer
    wd1, bd1 = linear(keys[4], 2, latent_dim)            # decoder[0]
    wd2, bd2 = linear(keys[5], latent_dim, hidden_dim)   # decoder[2]
    wd3, bd3 = linear(keys[6], hidden_dim, input_dim)    # decoder[4]
    return (w1, b1, w2, b2, wm, bm, wv, bv, wd1, bd1, wd2, bd2, wd3, bd3)


def vae_reference(x, eps, params):
    """Pure-JAX reference matching the torch forward semantics."""
    (w1, b1, w2, b2, wm, bm, wv, bv, wd1, bd1, wd2, bd2, wd3, bd3) = params
    lrelu = lambda h: jnp.where(h > 0, h, 0.2 * h)
    h = lrelu(x @ w1 + b1)
    h = lrelu(h @ w2 + b2)
    mean = h @ wm + bm
    log_var = h @ wv + bv
    z = mean + log_var * eps
    d = lrelu(z @ wd1 + bd1)
    d = lrelu(d @ wd2 + bd2)
    out = jax.nn.sigmoid(d @ wd3 + bd3)
    return out, mean, log_var


if __name__ == "__main__":
    input_dim, hidden_dim, latent_dim = 32, 32, 16
    batch = 512   # lane-dense batch axis; splits into 2x256 on v7x, 1x512 elsewhere

    key = jax.random.PRNGKey(0)
    k_params, k_x, k_eps = jax.random.split(key, 3)

    params = init_params(k_params, input_dim, hidden_dim, latent_dim)
    x = jax.random.uniform(k_x, (batch, input_dim), jnp.float32)    # pixel-like inputs
    eps = jax.random.normal(k_eps, (batch, 2), jnp.float32)         # reparameterization noise
    # TODO(synk): eps could be generated in-kernel with pltpu.prng_seed/prng_random_bits
    # (+ Box-Muller) to drop one input stream; kept external so the reference check is exact.

    recon, mean, log_var = vae_forward(x, eps, params)
    jax.block_until_ready((recon, mean, log_var))

    recon_ref, mean_ref, logvar_ref = vae_reference(x, eps, params)
    assert jnp.allclose(recon, recon_ref, atol=1e-5, rtol=1e-5)
    assert jnp.allclose(mean, mean_ref, atol=1e-5, rtol=1e-5)
    assert jnp.allclose(log_var, logvar_ref, atol=1e-5, rtol=1e-5)

    print("KERNEL_OK")
</pallas_src>

<mosaic_0001>
module attributes {stable_mosaic.version = 11 : i64} {
  func.func @vae_kernel(%arg0: i32, %arg1: memref<32x512xf32, #tpu.memory_space<vmem>>, %arg2: memref<2x512xf32, #tpu.memory_space<vmem>>, %arg3: memref<32x32xf32, #tpu.memory_space<vmem>>, %arg4: memref<32x1xf32, #tpu.memory_space<vmem>>, %arg5: memref<16x32xf32, #tpu.memory_space<vmem>>, %arg6: memref<16x1xf32, #tpu.memory_space<vmem>>, %arg7: memref<4x16xf32, #tpu.memory_space<vmem>>, %arg8: memref<4x1xf32, #tpu.memory_space<vmem>>, %arg9: memref<16x2xf32, #tpu.memory_space<vmem>>, %arg10: memref<16x1xf32, #tpu.memory_space<vmem>>, %arg11: memref<32x16xf32, #tpu.memory_space<vmem>>, %arg12: memref<32x1xf32, #tpu.memory_space<vmem>>, %arg13: memref<32x32xf32, #tpu.memory_space<vmem>>, %arg14: memref<32x1xf32, #tpu.memory_space<vmem>>, %arg15: memref<32x512xf32, #tpu.memory_space<vmem>>, %arg16: memref<4x512xf32, #tpu.memory_space<vmem>>) attributes {dimension_semantics = [#tpu.dimension_semantics<parallel>], iteration_bounds = array<i64: 1>, scalar_prefetch = 0 : i64, scratch_operands = 0 : i64, tpu.core_type = #tpu.core_type<tc>, window_params = [{transform_indices = @transform_0, window_bounds = array<i64: 32, 512>}, {transform_indices = @transform_1, window_bounds = array<i64: 2, 512>}, {pipeline_mode = #tpu.pipeline_mode<synchronous>, transform_indices = @transform_2, window_bounds = array<i64: 32, 32>}, {pipeline_mode = #tpu.pipeline_mode<synchronous>, transform_indices = @transform_3, window_bounds = array<i64: 32, 1>}, {pipeline_mode = #tpu.pipeline_mode<synchronous>, transform_indices = @transform_4, window_bounds = array<i64: 16, 32>}, {pipeline_mode = #tpu.pipeline_mode<synchronous>, transform_indices = @transform_5, window_bounds = array<i64: 16, 1>}, {pipeline_mode = #tpu.pipeline_mode<synchronous>, transform_indices = @transform_6, window_bounds = array<i64: 4, 16>}, {pipeline_mode = #tpu.pipeline_mode<synchronous>, transform_indices = @transform_7, window_bounds = array<i64: 4, 1>}, {pipeline_mode = #tpu.pipeline_mode<synchronous>, transform_indices = @transform_8, window_bounds = array<i64: 16, 2>}, {pipeline_mode = #tpu.pipeline_mode<synchronous>, transform_indices = @transform_9, window_bounds = array<i64: 16, 1>}, {pipeline_mode = #tpu.pipeline_mode<synchronous>, transform_indices = @transform_10, window_bounds = array<i64: 32, 16>}, {pipeline_mode = #tpu.pipeline_mode<synchronous>, transform_indices = @transform_11, window_bounds = array<i64: 32, 1>}, {pipeline_mode = #tpu.pipeline_mode<synchronous>, transform_indices = @transform_12, window_bounds = array<i64: 32, 32>}, {pipeline_mode = #tpu.pipeline_mode<synchronous>, transform_indices = @transform_13, window_bounds = array<i64: 32, 1>}, {transform_indices = @transform_14, window_bounds = array<i64: 32, 512>}, {transform_indices = @transform_15, window_bounds = array<i64: 4, 512>}]} {
    %c0 = arith.constant 0 : index
    %c0_0 = arith.constant 0 : index
    %0 = vector.load %arg1[%c0, %c0_0] : memref<32x512xf32, #tpu.memory_space<vmem>>, vector<32x512xf32>
    %c0_1 = arith.constant 0 : index
    %c0_2 = arith.constant 0 : index
    %1 = vector.load %arg3[%c0_1, %c0_2] : memref<32x32xf32, #tpu.memory_space<vmem>>, vector<32x32xf32>
    %cst = arith.constant dense<0.000000e+00> : vector<32x512xf32>
    %2 = tpu.matmul %1, %0, %cst {dimension_numbers = #tpu.dot_dimension_numbers<[1], [0], [0], [1], [0, 0, 1, 1], [], []>} : vector<32x32xf32>, vector<32x512xf32>, vector<32x512xf32> -> vector<32x512xf32>
    %c0_3 = arith.constant 0 : index
    %c0_4 = arith.constant 0 : index
    %3 = vector.load %arg4[%c0_3, %c0_4] : memref<32x1xf32, #tpu.memory_space<vmem>>, vector<32x1xf32>
    %4 = vector.broadcast %3 : vector<32x1xf32> to vector<32x512xf32>
    %5 = arith.addf %2, %4 : vector<32x512xf32>
    %cst_5 = arith.constant 0.000000e+00 : f32
    %6 = vector.broadcast %cst_5 : f32 to vector<32x512xf32>
    %7 = arith.cmpf ogt, %5, %6 : vector<32x512xf32>
    %cst_6 = arith.constant 2.000000e-01 : f32
    %8 = vector.broadcast %cst_6 : f32 to vector<32x512xf32>
    %9 = arith.mulf %8, %5 : vector<32x512xf32>
    %10 = arith.select %7, %5, %9 : vector<32x512xi1>, vector<32x512xf32>
    %c0_7 = arith.constant 0 : index
    %c0_8 = arith.constant 0 : index
    %11 = vector.load %arg5[%c0_7, %c0_8] : memref<16x32xf32, #tpu.memory_space<vmem>>, vector<16x32xf32>
    %cst_9 = arith.constant dense<0.000000e+00> : vector<16x512xf32>
    %12 = tpu.matmul %11, %10, %cst_9 {dimension_numbers = #tpu.dot_dimension_numbers<[1], [0], [0], [1], [0, 0, 1, 1], [], []>} : vector<16x32xf32>, vector<32x512xf32>, vector<16x512xf32> -> vector<16x512xf32>
    %c0_10 = arith.constant 0 : index
    %c0_11 = arith.constant 0 : index
    %13 = vector.load %arg6[%c0_10, %c0_11] : memref<16x1xf32, #tpu.memory_space<vmem>>, vector<16x1xf32>
    %14 = vector.broadcast %13 : vector<16x1xf32> to vector<16x512xf32>
    %15 = arith.addf %12, %14 : vector<16x512xf32>
    %cst_12 = arith.constant 0.000000e+00 : f32
    %16 = vector.broadcast %cst_12 : f32 to vector<16x512xf32>
    %17 = arith.cmpf ogt, %15, %16 : vector<16x512xf32>
    %cst_13 = arith.constant 2.000000e-01 : f32
    %18 = vector.broadcast %cst_13 : f32 to vector<16x512xf32>
    %19 = arith.mulf %18, %15 : vector<16x512xf32>
    %20 = arith.select %17, %15, %19 : vector<16x512xi1>, vector<16x512xf32>
    %c0_14 = arith.constant 0 : index
    %c0_15 = arith.constant 0 : index
    %21 = vector.load %arg7[%c0_14, %c0_15] : memref<4x16xf32, #tpu.memory_space<vmem>>, vector<4x16xf32>
    %cst_16 = arith.constant dense<0.000000e+00> : vector<4x512xf32>
    %22 = tpu.matmul %21, %20, %cst_16 {dimension_numbers = #tpu.dot_dimension_numbers<[1], [0], [0], [1], [0, 0, 1, 1], [], []>} : vector<4x16xf32>, vector<16x512xf32>, vector<4x512xf32> -> vector<4x512xf32>
    %c0_17 = arith.constant 0 : index
    %c0_18 = arith.constant 0 : index
    %23 = vector.load %arg8[%c0_17, %c0_18] : memref<4x1xf32, #tpu.memory_space<vmem>>, vector<4x1xf32>
    %24 = vector.broadcast %23 : vector<4x1xf32> to vector<4x512xf32>
    %25 = arith.addf %22, %24 : vector<4x512xf32>
    %26 = vector.extract_strided_slice %25 {offsets = [0, 0], sizes = [2, 512], strides = [1, 1]} : vector<4x512xf32> to vector<2x512xf32>
    %27 = vector.extract_strided_slice %25 {offsets = [2, 0], sizes = [2, 512], strides = [1, 1]} : vector<4x512xf32> to vector<2x512xf32>
    %c0_19 = arith.constant 0 : index
    %c0_20 = arith.constant 0 : index
    %28 = vector.load %arg2[%c0_19, %c0_20] : memref<2x512xf32, #tpu.memory_space<vmem>>, vector<2x512xf32>
    %29 = arith.mulf %27, %28 : vector<2x512xf32>
    %30 = arith.addf %26, %29 : vector<2x512xf32>
    %c0_21 = arith.constant 0 : index
    %c0_22 = arith.constant 0 : index
    %31 = vector.load %arg9[%c0_21, %c0_22] : memref<16x2xf32, #tpu.memory_space<vmem>>, vector<16x1xf32>
    %32 = vector.extract_strided_slice %30 {offsets = [0, 0], sizes = [1, 512], strides = [1, 1]} : vector<2x512xf32> to vector<1x512xf32>
    %33 = vector.broadcast %31 : vector<16x1xf32> to vector<16x512xf32>
    %34 = vector.broadcast %32 : vector<1x512xf32> to vector<16x512xf32>
    %35 = arith.mulf %33, %34 : vector<16x512xf32>
    %c0_23 = arith.constant 0 : index
    %c1 = arith.constant 1 : index
    %36 = vector.load %arg9[%c0_23, %c1] : memref<16x2xf32, #tpu.memory_space<vmem>>, vector<16x1xf32>
    %37 = vector.extract_strided_slice %30 {offsets = [1, 0], sizes = [1, 512], strides = [1, 1]} : vector<2x512xf32> to vector<1x512xf32>
    %38 = vector.broadcast %36 : vector<16x1xf32> to vector<16x512xf32>
    %39 = vector.broadcast %37 : vector<1x512xf32> to vector<16x512xf32>
    %40 = arith.mulf %38, %39 : vector<16x512xf32>
    %41 = arith.addf %35, %40 : vector<16x512xf32>
    %c0_24 = arith.constant 0 : index
    %c0_25 = arith.constant 0 : index
    %42 = vector.load %arg10[%c0_24, %c0_25] : memref<16x1xf32, #tpu.memory_space<vmem>>, vector<16x1xf32>
    %43 = vector.broadcast %42 : vector<16x1xf32> to vector<16x512xf32>
    %44 = arith.addf %41, %43 : vector<16x512xf32>
    %cst_26 = arith.constant 0.000000e+00 : f32
    %45 = vector.broadcast %cst_26 : f32 to vector<16x512xf32>
    %46 = arith.cmpf ogt, %44, %45 : vector<16x512xf32>
    %cst_27 = arith.constant 2.000000e-01 : f32
    %47 = vector.broadcast %cst_27 : f32 to vector<16x512xf32>
    %48 = arith.mulf %47, %44 : vector<16x512xf32>
    %49 = arith.select %46, %44, %48 : vector<16x512xi1>, vector<16x512xf32>
    %c0_28 = arith.constant 0 : index
    %c0_29 = arith.constant 0 : index
    %50 = vector.load %arg11[%c0_28, %c0_29] : memref<32x16xf32, #tpu.memory_space<vmem>>, vector<32x16xf32>
    %cst_30 = arith.constant dense<0.000000e+00> : vector<32x512xf32>
    %51 = tpu.matmul %50, %49, %cst_30 {dimension_numbers = #tpu.dot_dimension_numbers<[1], [0], [0], [1], [0, 0, 1, 1], [], []>} : vector<32x16xf32>, vector<16x512xf32>, vector<32x512xf32> -> vector<32x512xf32>
    %c0_31 = arith.constant 0 : index
    %c0_32 = arith.constant 0 : index
    %52 = vector.load %arg12[%c0_31, %c0_32] : memref<32x1xf32, #tpu.memory_space<vmem>>, vector<32x1xf32>
    %53 = vector.broadcast %52 : vector<32x1xf32> to vector<32x512xf32>
    %54 = arith.addf %51, %53 : vector<32x512xf32>
    %cst_33 = arith.constant 0.000000e+00 : f32
    %55 = vector.broadcast %cst_33 : f32 to vector<32x512xf32>
    %56 = arith.cmpf ogt, %54, %55 : vector<32x512xf32>
    %cst_34 = arith.constant 2.000000e-01 : f32
    %57 = vector.broadcast %cst_34 : f32 to vector<32x512xf32>
    %58 = arith.mulf %57, %54 : vector<32x512xf32>
    %59 = arith.select %56, %54, %58 : vector<32x512xi1>, vector<32x512xf32>
    %c0_35 = arith.constant 0 : index
    %c0_36 = arith.constant 0 : index
    %60 = vector.load %arg13[%c0_35, %c0_36] : memref<32x32xf32, #tpu.memory_space<vmem>>, vector<32x32xf32>
    %cst_37 = arith.constant dense<0.000000e+00> : vector<32x512xf32>
    %61 = tpu.matmul %60, %59, %cst_37 {dimension_numbers = #tpu.dot_dimension_numbers<[1], [0], [0], [1], [0, 0, 1, 1], [], []>} : vector<32x32xf32>, vector<32x512xf32>, vector<32x512xf32> -> vector<32x512xf32>
    %c0_38 = arith.constant 0 : index
    %c0_39 = arith.constant 0 : index
    %62 = vector.load %arg14[%c0_38, %c0_39] : memref<32x1xf32, #tpu.memory_space<vmem>>, vector<32x1xf32>
    %63 = vector.broadcast %62 : vector<32x1xf32> to vector<32x512xf32>
    %64 = arith.addf %61, %63 : vector<32x512xf32>
    %65 = arith.negf %64 : vector<32x512xf32>
    %66 = math.exp %65 : vector<32x512xf32>
    %cst_40 = arith.constant 1.000000e+00 : f32
    %67 = vector.broadcast %cst_40 : f32 to vector<32x512xf32>
    %68 = arith.addf %67, %66 : vector<32x512xf32>
    %69 = arith.divf %67, %68 : vector<32x512xf32>
    %c0_41 = arith.constant 0 : index
    %c0_42 = arith.constant 0 : index
    %70 = vector.load %arg15[%c0_41, %c0_42] : memref<32x512xf32, #tpu.memory_space<vmem>>, vector<32x512xf32>
    tpu.vector_store %arg15[%c0_41, %c0_42], %69 {strides = array<i32>} : memref<32x512xf32, #tpu.memory_space<vmem>>, vector<32x512xf32>,
    %c0_43 = arith.constant 0 : index
    %c0_44 = arith.constant 0 : index
    %71 = vector.load %arg16[%c0_43, %c0_44] : memref<4x512xf32, #tpu.memory_space<vmem>>, vector<4x512xf32>
    tpu.vector_store %arg16[%c0_43, %c0_44], %25 {strides = array<i32>} : memref<4x512xf32, #tpu.memory_space<vmem>>, vector<4x512xf32>,
    return
  }
  func.func @transform_0(%arg0: i32) -> (i32, i32) {
    %c0_i32 = arith.constant 0 : i32
    %c0_i32_0 = arith.constant 0 : i32
    return %c0_i32, %arg0 : i32, i32
  }
  func.func @transform_1(%arg0: i32) -> (i32, i32) {
    %c0_i32 = arith.constant 0 : i32
    %c0_i32_0 = arith.constant 0 : i32
    return %c0_i32, %arg0 : i32, i32
  }
  func.func @transform_2(%arg0: i32) -> (i32, i32) {
    %c0_i32 = arith.constant 0 : i32
    %c0_i32_0 = arith.constant 0 : i32
    %c0_i32_1 = arith.constant 0 : i32
    return %c0_i32, %c0_i32_0 : i32, i32
  }
  func.func @transform_3(%arg0: i32) -> (i32, i32) {
    %c0_i32 = arith.constant 0 : i32
    %c0_i32_0 = arith.constant 0 : i32
    %c0_i32_1 = arith.constant 0 : i32
    return %c0_i32, %c0_i32_0 : i32, i32
  }
  func.func @transform_4(%arg0: i32) -> (i32, i32) {
    %c0_i32 = arith.constant 0 : i32
    %c0_i32_0 = arith.constant 0 : i32
    %c0_i32_1 = arith.constant 0 : i32
    return %c0_i32, %c0_i32_0 : i32, i32
  }
  func.func @transform_5(%arg0: i32) -> (i32, i32) {
    %c0_i32 = arith.constant 0 : i32
    %c0_i32_0 = arith.constant 0 : i32
    %c0_i32_1 = arith.constant 0 : i32
    return %c0_i32, %c0_i32_0 : i32, i32
  }
  func.func @transform_6(%arg0: i32) -> (i32, i32) {
    %c0_i32 = arith.constant 0 : i32
    %c0_i32_0 = arith.constant 0 : i32
    %c0_i32_1 = arith.constant 0 : i32
    return %c0_i32, %c0_i32_0 : i32, i32
  }
  func.func @transform_7(%arg0: i32) -> (i32, i32) {
    %c0_i32 = arith.constant 0 : i32
    %c0_i32_0 = arith.constant 0 : i32
    %c0_i32_1 = arith.constant 0 : i32
    return %c0_i32, %c0_i32_0 : i32, i32
  }
  func.func @transform_8(%arg0: i32) -> (i32, i32) {
    %c0_i32 = arith.constant 0 : i32
    %c0_i32_0 = arith.constant 0 : i32
    %c0_i32_1 = arith.constant 0 : i32
    return %c0_i32, %c0_i32_0 : i32, i32
  }
  func.func @transform_9(%arg0: i32) -> (i32, i32) {
    %c0_i32 = arith.constant 0 : i32
    %c0_i32_0 = arith.constant 0 : i32
    %c0_i32_1 = arith.constant 0 : i32
    return %c0_i32, %c0_i32_0 : i32, i32
  }
  func.func @transform_10(%arg0: i32) -> (i32, i32) {
    %c0_i32 = arith.constant 0 : i32
    %c0_i32_0 = arith.constant 0 : i32
    %c0_i32_1 = arith.constant 0 : i32
    return %c0_i32, %c0_i32_0 : i32, i32
  }
  func.func @transform_11(%arg0: i32) -> (i32, i32) {
    %c0_i32 = arith.constant 0 : i32
    %c0_i32_0 = arith.constant 0 : i32
    %c0_i32_1 = arith.constant 0 : i32
    return %c0_i32, %c0_i32_0 : i32, i32
  }
  func.func @transform_12(%arg0: i32) -> (i32, i32) {
    %c0_i32 = arith.constant 0 : i32
    %c0_i32_0 = arith.constant 0 : i32
    %c0_i32_1 = arith.constant 0 : i32
    return %c0_i32, %c0_i32_0 : i32, i32
  }
  func.func @transform_13(%arg0: i32) -> (i32, i32) {
    %c0_i32 = arith.constant 0 : i32
    %c0_i32_0 = arith.constant 0 : i32
    %c0_i32_1 = arith.constant 0 : i32
    return %c0_i32, %c0_i32_0 : i32, i32
  }
  func.func @transform_14(%arg0: i32) -> (i32, i32) {
    %c0_i32 = arith.constant 0 : i32
    %c0_i32_0 = arith.constant 0 : i32
    return %c0_i32, %arg0 : i32, i32
  }
  func.func @transform_15(%arg0: i32) -> (i32, i32) {
    %c0_i32 = arith.constant 0 : i32
    %c0_i32_0 = arith.constant 0 : i32
    return %c0_i32, %arg0 : i32, i32
  }
}

</mosaic_0001>

<llo_original>
// kernel: _vae_forward_impl.1
$region0: #{_vae_forward_impl.1}
  #allocation0 [shape = 'u32[]', space=smem, size = 0x4, offset = 0x4, fixed_abs, tag = 'smem constant byte address 0x4 - core index']
  #allocation1 [shape = 'u32[144,128]{1,0:T(1,128)}', space=vmem, size = 0x12000, scoped, tag = 'internal scratch']
  %s0 = inlined_call_operand.vmem [shape: f32[32,512], index: 0, kind: input, shape index: {}]
  %s1 = inlined_call_operand.vmem [shape: f32[2,512], index: 1, kind: input, shape index: {}]
  %s2 = inlined_call_operand.vmem [shape: f32[32,32], index: 2, kind: input, shape index: {}]
  %s3 = inlined_call_operand.vmem [shape: f32[32,1], index: 3, kind: input, shape index: {}]
  %s4 = inlined_call_operand.vmem [shape: f32[16,32], index: 4, kind: input, shape index: {}]
  %s5 = inlined_call_operand.vmem [shape: f32[16,1], index: 5, kind: input, shape index: {}]
  %s6 = inlined_call_operand.vmem [shape: f32[4,16], index: 6, kind: input, shape index: {}]
  %s7 = inlined_call_operand.vmem [shape: f32[4,1], index: 7, kind: input, shape index: {}]
  %s8 = inlined_call_operand.vmem [shape: f32[16,2], index: 8, kind: input, shape index: {}]
  %s9 = inlined_call_operand.vmem [shape: f32[16,1], index: 9, kind: input, shape index: {}]
  %s10 = inlined_call_operand.vmem [shape: f32[32,16], index: 10, kind: input, shape index: {}]
  %s11 = inlined_call_operand.vmem [shape: f32[32,1], index: 11, kind: input, shape index: {}]
  %s12 = inlined_call_operand.vmem [shape: f32[32,32], index: 12, kind: input, shape index: {}]
  %s13 = inlined_call_operand.vmem [shape: f32[32,1], index: 13, kind: input, shape index: {}]
  %s14 = inlined_call_operand.hbm [shape: f32[32,512], index: 14, kind: output, shape index: {0}]
  %s15 = inlined_call_operand.vmem [shape: f32[4,512], index: 15, kind: output, shape index: {1}]
  %16 = xla_tuple %s14, %s15
  %s17 = sld [smem:[#allocation0]]
  $region74: #{_vae_forward_impl.1} parent=0
    _
  %s19 = ssub.s32 1, %s17
  %s20 = scalar_select 0, %s19, %s17
  $region1: #{_vae_forward_impl.1} parent=0
    #allocation2 [shape = 'u8[65536]{0}', space=vmem, size = 0x10000, scoped, tag = 'output window, operand 0, single buffered']
    #allocation3 [shape = 's32[1]{0}', space=sflag, size = 0x4, scoped, tag = 'scoped memory for _vae_forward_impl.1']
    %21 = vsyncpa [#allocation3], 0
    // Predicated region
    $region2: #{_vae_forward_impl.1} parent=1 // pred_check
      _
    $region3: #{_vae_forward_impl.1} parent=1 // pred_check_branch
      %23 = sbr.rel (0) target = $region5
    $region4: #{_vae_forward_impl.1} parent=1 // pred_region
      _
    $region5: #{_vae_forward_impl.1} parent=1 // pred_fallthru
      _
    // Predicated region
    $region6: #{_vae_forward_impl.1} parent=1 // pred_check
      _
    $region7: #{_vae_forward_impl.1} parent=1 // pred_check_branch
      %25 = sbr.rel (0) target = $region9
    $region8: #{_vae_forward_impl.1} parent=1 // pred_region
      _
    $region9: #{_vae_forward_impl.1} parent=1 // pred_fallthru
      _
    // Predicated region
    $region10: #{_vae_forward_impl.1} parent=1 // pred_check
      _
    $region11: #{_vae_forward_impl.1} parent=1 // pred_check_branch
      %27 = sbr.rel (0) target = $region13
    $region12: #{_vae_forward_impl.1} parent=1 // pred_region
      _
    $region13: #{_vae_forward_impl.1} parent=1 // pred_fallthru
      _
    // Predicated region
    $region14: #{_vae_forward_impl.1} parent=1 // pred_check
      _
    $region15: #{_vae_forward_impl.1} parent=1 // pred_check_branch
      %29 = sbr.rel (0) target = $region17
    $region16: #{_vae_forward_impl.1} parent=1 // pred_region
      _
    $region17: #{_vae_forward_impl.1} parent=1 // pred_fallthru
      _
    // Predicated region
    $region18: #{_vae_forward_impl.1} parent=1 // pred_check
      _
    $region19: #{_vae_forward_impl.1} parent=1 // pred_check_branch
      %31 = sbr.rel (0) target = $region21
    $region20: #{_vae_forward_impl.1} parent=1 // pred_region
      _
    $region21: #{_vae_forward_impl.1} parent=1 // pred_fallthru
      _
    // Predicated region
    $region22: #{_vae_forward_impl.1} parent=1 // pred_check
      _
    $region23: #{_vae_forward_impl.1} parent=1 // pred_check_branch
      %33 = sbr.rel (0) target = $region25
    $region24: #{_vae_forward_impl.1} parent=1 // pred_region
      _
    $region25: #{_vae_forward_impl.1} parent=1 // pred_fallthru
      _
    // Predicated region
    $region26: #{_vae_forward_impl.1} parent=1 // pred_check
      _
    $region27: #{_vae_forward_impl.1} parent=1 // pred_check_branch
      %35 = sbr.rel (0) target = $region29
    $region28: #{_vae_forward_impl.1} parent=1 // pred_region
      _
    $region29: #{_vae_forward_impl.1} parent=1 // pred_fallthru
      _
    // Predicated region
    $region30: #{_vae_forward_impl.1} parent=1 // pred_check
      _
    $region31: #{_vae_forward_impl.1} parent=1 // pred_check_branch
      %37 = sbr.rel (0) target = $region33
    $region32: #{_vae_forward_impl.1} parent=1 // pred_region
      _
    $region33: #{_vae_forward_impl.1} parent=1 // pred_fallthru
      _
    // Predicated region
    $region34: #{_vae_forward_impl.1} parent=1 // pred_check
      _
    $region35: #{_vae_forward_impl.1} parent=1 // pred_check_branch
      %39 = sbr.rel (0) target = $region37
    $region36: #{_vae_forward_impl.1} parent=1 // pred_region
      _
    $region37: #{_vae_forward_impl.1} parent=1 // pred_fallthru
      _
    // Predicated region
    $region38: #{_vae_forward_impl.1} parent=1 // pred_check
      _
    $region39: #{_vae_forward_impl.1} parent=1 // pred_check_branch
      %41 = sbr.rel (0) target = $region41
    $region40: #{_vae_forward_impl.1} parent=1 // pred_region
      _
    $region41: #{_vae_forward_impl.1} parent=1 // pred_fallthru
      _
    // Predicated region
    $region42: #{_vae_forward_impl.1} parent=1 // pred_check
      _
    $region43: #{_vae_forward_impl.1} parent=1 // pred_check_branch
      %43 = sbr.rel (0) target = $region45
    $region44: #{_vae_forward_impl.1} parent=1 // pred_region
      _
    $region45: #{_vae_forward_impl.1} parent=1 // pred_fallthru
      _
    // Predicated region
    $region46: #{_vae_forward_impl.1} parent=1 // pred_check
      _
    $region47: #{_vae_forward_impl.1} parent=1 // pred_check_branch
      %45 = sbr.rel (0) target = $region49
    $region48: #{_vae_forward_impl.1} parent=1 // pred_region
      _
    $region49: #{_vae_forward_impl.1} parent=1 // pred_fallthru
      _
    // Predicated region
    $region50: #{_vae_forward_impl.1} parent=1 // pred_check
      _
    $region51: #{_vae_forward_impl.1} parent=1 // pred_check_branch
      %47 = sbr.rel (0) target = $region53
    $region52: #{_vae_forward_impl.1} parent=1 // pred_region
      _
    $region53: #{_vae_forward_impl.1} parent=1 // pred_fallthru
      _
    // Predicated region
    $region54: #{_vae_forward_impl.1} parent=1 // pred_check
      _
    $region55: #{_vae_forward_impl.1} parent=1 // pred_check_branch
      %49 = sbr.rel (0) target = $region57
    $region56: #{_vae_forward_impl.1} parent=1 // pred_region
      _
    $region57: #{_vae_forward_impl.1} parent=1 // pred_fallthru
      _
    %v50 = vld [vmem:[%s0] sm:$0xff]
    %v51 = vld [vmem:[%s0 + $0x8] sm:$0xff]
    %v52 = vld [vmem:[%s0 + $0x10] sm:$0xff]
    %v53 = vld [vmem:[%s0 + $0x18] sm:$0xff]
    %v54 = vld [vmem:[%s0 + $0x20] sm:$0xff]
    %v55 = vld [vmem:[%s0 + $0x28] sm:$0xff]
    %v56 = vld [vmem:[%s0 + $0x30] sm:$0xff]
    %v57 = vld [vmem:[%s0 + $0x38] sm:$0xff]
    %v58 = vld [vmem:[%s0 + $0x40] sm:$0xff]
    %v59 = vld [vmem:[%s0 + $0x48] sm:$0xff]
    %v60 = vld [vmem:[%s0 + $0x50] sm:$0xff]
    %v61 = vld [vmem:[%s0 + $0x58] sm:$0xff]
    %v62 = vld [vmem:[%s0 + $0x60] sm:$0xff]
    %v63 = vld [vmem:[%s0 + $0x68] sm:$0xff]
    %v64 = vld [vmem:[%s0 + $0x70] sm:$0xff]
    %v65 = vld [vmem:[%s0 + $0x78] sm:$0xff]
    %v66 = vld [vmem:[%s2] sm:$0xff]
    %v67 = vld [vmem:[%s2 + $0x8] sm:$0xff]
    %v68 = vld [vmem:[%s2 + $0x10] sm:$0xff]
    %v69 = vld [vmem:[%s2 + $0x18] sm:$0xff]
    %v70 = vld [vmem:[%s3] sm:$0xff]
    %v71 = vld [vmem:[%s3 + $0x8] sm:$0xff]
    %v72 = vld [vmem:[%s3 + $0x10] sm:$0xff]
    %v73 = vld [vmem:[%s3 + $0x18] sm:$0xff]
    %75 = vset.pattern.permute.xlu0 0
    %76 = vperm.xlu0 %75, %v70
    %v77 = vpop.permute.xlu0 %76
    %80 = vset.pattern.permute.xlu0 0
    %81 = vperm.xlu0 %80, %v71
    %v82 = vpop.permute.xlu0 %81
    %85 = vset.pattern.permute.xlu0 0
    %86 = vperm.xlu0 %85, %v72
    %v87 = vpop.permute.xlu0 %86
    %90 = vset.pattern.permute.xlu0 0
    %91 = vperm.xlu0 %90, %v73
    %v92 = vpop.permute.xlu0 %91
    %vm94 = vcmask 261120
    %v96 = vsel %vm94, %v66, 0
    %v99 = vsel %vm94, %v67, 0
    %v102 = vsel %vm94, %v68, 0
    %v105 = vsel %vm94, %v69, 0
    %107 = vmatprep.subr.mxu0 0.0
    %108 = vmatpush1.msra.mxu0 0.0
    %109 = vmatprep.subr.mxu0 0.0
    %110 = vmatpush1.msra.mxu0 0.0
    %111 = vmatprep.subr.mxu0 0.0
    %112 = vmatpush1.msra.mxu0 0.0
    %113 = vmatprep.subr.mxu0 0.0
    %114 = vmatpush1.msra.mxu0 0.0
    %115 = vmatprep.subr.mxu0 0.0
    %116 = vmatpush1.msra.mxu0 0.0
    %117 = vmatprep.subr.mxu0 0.0
    %118 = vmatpush1.msra.mxu0 0.0
    %119 = vmatprep.subr.mxu0 0.0
    %120 = vmatpush1.msra.mxu0 0.0
    %121 = vmatprep.subr.mxu0 0.0
    %122 = vmatpush1.msra.mxu0 0.0
    %123 = vmatprep.subr.mxu0 0.0
    %124 = vmatpush1.msra.mxu0 0.0
    %125 = vmatprep.subr.mxu0 0.0
    %126 = vmatpush1.msra.mxu0 0.0
    %127 = vmatprep.subr.mxu0 0.0
    %128 = vmatpush1.msra.mxu0 0.0
    %129 = vmatprep.subr.mxu0 0.0
    %130 = vmatpush1.msra.mxu0 0.0
    %131 = vmatprep.subr.mxu0 %v63
    %132 = vmatpush1.msra.mxu0 %v62
    %133 = vmatprep.subr.mxu0 %v59
    %134 = vmatpush1.msra.mxu0 %v58
    %135 = vmatprep.subr.mxu0 %v55
    %136 = vmatpush1.msra.mxu0 %v54
    %137 = vmatprep.subr.mxu0 %v51
    %138 = vmatpush1.msra.mxu0 %v50
    %139 = vmatprep.subr.mxu0 0.0
    %140 = vmatpush2.msra.mxu0 0.0
    %141 = vmatprep.subr.mxu0 0.0
    %142 = vmatpush2.msra.mxu0 0.0
    %143 = vmatprep.subr.mxu0 0.0
    %144 = vmatpush2.msra.mxu0 0.0
    %145 = vmatprep.subr.mxu0 0.0
    %146 = vmatpush2.msra.mxu0 0.0
    %147 = vmatprep.subr.mxu0 0.0
    %148 = vmatpush2.msra.mxu0 0.0
    %149 = vmatprep.subr.mxu0 0.0
    %150 = vmatpush2.msra.mxu0 0.0
    %151 = vmatprep.subr.mxu0 0.0
    %152 = vmatpush2.msra.mxu0 0.0
    %153 = vmatprep.subr.mxu0 0.0
    %154 = vmatpush2.msra.mxu0 0.0
    %155 = vmatprep.subr.mxu0 0.0
    %156 = vmatpush2.msra.mxu0 0.0
    %157 = vmatprep.subr.mxu0 0.0
    %158 = vmatpush2.msra.mxu0 0.0
    %159 = vmatprep.subr.mxu0 0.0
    %160 = vmatpush2.msra.mxu0 0.0
    %161 = vmatprep.subr.mxu0 0.0
    %162 = vmatpush2.msra.mxu0 0.0
    %163 = vmatprep.subr.mxu0 0.0
    %164 = vmatpush2.msra.mxu0 0.0
    %165 = vmatprep.subr.mxu0 0.0
    %166 = vmatpush2.msra.mxu0 0.0
    %167 = vmatprep.subr.mxu0 0.0
    %168 = vmatpush2.msra.mxu0 0.0
    %169 = vmatprep.subr.mxu0 0.0
    %170 = vmatpush2.msra.mxu0 0.0
    %171 = vmatprep.mubr.f32.mxu0 0.0
    %172 = vmatmul.mubr.f32.gmra.mxu0 %v96
    %v173 = vpop.f32.mrf.mxu0
    %v174 = vadd.f32 %v77, %v173
    %v175 = vpop.f32.mrf.mxu0
    %v176 = vadd.f32 %v77, %v175
    %177 = vmatprep.mubr.f32.mxu0 0.0
    %178 = vmatmul.mubr.f32.gmra.mxu0 %v99
    %v179 = vpop.f32.mrf.mxu0
    %v180 = vadd.f32 %v82, %v179
    %v181 = vpop.f32.mrf.mxu0
    %v182 = vadd.f32 %v82, %v181
    %183 = vmatprep.mubr.f32.mxu0 0.0
    %184 = vmatmul.mubr.f32.gmra.mxu0 %v102
    %v185 = vpop.f32.mrf.mxu0
    %v186 = vadd.f32 %v87, %v185
    %v187 = vpop.f32.mrf.mxu0
    %v188 = vadd.f32 %v87, %v187
    %189 = vmatprep.mubr.f32.mxu0 0.0
    %190 = vmatmul.mubr.f32.gmra.mxu0 %v105
    %v191 = vpop.f32.mrf.mxu0
    %v192 = vadd.f32 %v92, %v191
    %v193 = vpop.f32.mrf.mxu0
    %v194 = vadd.f32 %v92, %v193
    %195 = vdwg.mxu0
    %196 = vmatprep.subr.mxu0 0.0
    %197 = vmatpush1.msra.mxu0 0.0
    %198 = vmatprep.subr.mxu0 0.0
    %199 = vmatpush1.msra.mxu0 0.0
    %200 = vmatprep.subr.mxu0 0.0
    %201 = vmatpush1.msra.mxu0 0.0
    %202 = vmatprep.subr.mxu0 0.0
    %203 = vmatpush1.msra.mxu0 0.0
    %204 = vmatprep.subr.mxu0 0.0
    %205 = vmatpush1.msra.mxu0 0.0
    %206 = vmatprep.subr.mxu0 0.0
    %207 = vmatpush1.msra.mxu0 0.0
    %208 = vmatprep.subr.mxu0 0.0
    %209 = vmatpush1.msra.mxu0 0.0
    %210 = vmatprep.subr.mxu0 0.0
    %211 = vmatpush1.msra.mxu0 0.0
    %212 = vmatprep.subr.mxu0 0.0
    %213 = vmatpush1.msra.mxu0 0.0
    %214 = vmatprep.subr.mxu0 0.0
    %215 = vmatpush1.msra.mxu0 0.0
    %216 = vmatprep.subr.mxu0 0.0
    %217 = vmatpush1.msra.mxu0 0.0
    %218 = vmatprep.subr.mxu0 0.0
    %219 = vmatpush1.msra.mxu0 0.0
    %220 = vmatprep.subr.mxu0 %v65
    %221 = vmatpush1.msra.mxu0 %v64
    %222 = vmatprep.subr.mxu0 %v61
    %223 = vmatpush1.msra.mxu0 %v60
    %224 = vmatprep.subr.mxu0 %v57
    %225 = vmatpush1.msra.mxu0 %v56
    %226 = vmatprep.subr.mxu0 %v53
    %227 = vmatpush1.msra.mxu0 %v52
    %228 = vmatprep.subr.mxu0 0.0
    %229 = vmatpush2.msra.mxu0 0.0
    %230 = vmatprep.subr.mxu0 0.0
    %231 = vmatpush2.msra.mxu0 0.0
    %232 = vmatprep.subr.mxu0 0.0
    %233 = vmatpush2.msra.mxu0 0.0
    %234 = vmatprep.subr.mxu0 0.0
    %235 = vmatpush2.msra.mxu0 0.0
    %236 = vmatprep.subr.mxu0 0.0
    %237 = vmatpush2.msra.mxu0 0.0
    %238 = vmatprep.subr.mxu0 0.0
    %239 = vmatpush2.msra.mxu0 0.0
    %240 = vmatprep.subr.mxu0 0.0
    %241 = vmatpush2.msra.mxu0 0.0
    %242 = vmatprep.subr.mxu0 0.0
    %243 = vmatpush2.msra.mxu0 0.0
    %244 = vmatprep.subr.mxu0 0.0
    %245 = vmatpush2.msra.mxu0 0.0
    %246 = vmatprep.subr.mxu0 0.0
    %247 = vmatpush2.msra.mxu0 0.0
    %248 = vmatprep.subr.mxu0 0.0
    %249 = vmatpush2.msra.mxu0 0.0
    %250 = vmatprep.subr.mxu0 0.0
    %251 = vmatpush2.msra.mxu0 0.0
    %252 = vmatprep.subr.mxu0 0.0
    %253 = vmatpush2.msra.mxu0 0.0
    %254 = vmatprep.subr.mxu0 0.0
    %255 = vmatpush2.msra.mxu0 0.0
    %256 = vmatprep.subr.mxu0 0.0
    %257 = vmatpush2.msra.mxu0 0.0
    %258 = vmatprep.subr.mxu0 0.0
    %259 = vmatpush2.msra.mxu0 0.0
    %260 = vmatprep.mubr.f32.mxu0 0.0
    %261 = vmatmul.mubr.f32.gmra.mxu0 %v96
    %v262 = vpop.f32.mrf.mxu0
    %v263 = vadd.f32 %v77, %v262
    %v264 = vpop.f32.mrf.mxu0
    %v265 = vadd.f32 %v77, %v264
    %266 = vmatprep.mubr.f32.mxu0 0.0
    %267 = vmatmul.mubr.f32.gmra.mxu0 %v99
    %v268 = vpop.f32.mrf.mxu0
    %v269 = vadd.f32 %v82, %v268
    %v270 = vpop.f32.mrf.mxu0
    %v271 = vadd.f32 %v82, %v270
    %272 = vmatprep.mubr.f32.mxu0 0.0
    %273 = vmatmul.mubr.f32.gmra.mxu0 %v102
    %v274 = vpop.f32.mrf.mxu0
    %v275 = vadd.f32 %v87, %v274
    %v276 = vpop.f32.mrf.mxu0
    %v277 = vadd.f32 %v87, %v276
    %278 = vmatprep.mubr.f32.mxu0 0.0
    %279 = vmatmul.mubr.f32.gmra.mxu0 %v105
    %v280 = vpop.f32.mrf.mxu0
    %v281 = vadd.f32 %v92, %v280
    %v282 = vpop.f32.mrf.mxu0
    %v283 = vadd.f32 %v92, %v282
    %284 = vdwg.mxu0
    %vm285 = vcmp.gt.f32.partialorder %v174, 0.0
    %vm286 = vcmp.gt.f32.partialorder %v176, 0.0
    %vm287 = vcmp.gt.f32.partialorder %v263, 0.0
    %vm288 = vcmp.gt.f32.partialorder %v265, 0.0
    %vm289 = vcmp.gt.f32.partialorder %v180, 0.0
    %vm290 = vcmp.gt.f32.partialorder %v182, 0.0
    %vm291 = vcmp.gt.f32.partialorder %v269, 0.0
    %vm292 = vcmp.gt.f32.partialorder %v271, 0.0
    %vm293 = vcmp.gt.f32.partialorder %v186, 0.0
    %vm294 = vcmp.gt.f32.partialorder %v188, 0.0
    %vm295 = vcmp.gt.f32.partialorder %v275, 0.0
    %vm296 = vcmp.gt.f32.partialorder %v277, 0.0
    %vm297 = vcmp.gt.f32.partialorder %v192, 0.0
    %vm298 = vcmp.gt.f32.partialorder %v194, 0.0
    %vm299 = vcmp.gt.f32.partialorder %v281, 0.0
    %vm300 = vcmp.gt.f32.partialorder %v283, 0.0
    %v301 = vmul.f32 %v174, 0.2
    %v302 = vmul.f32 %v176, 0.2
    %v303 = vmul.f32 %v263, 0.2
    %v304 = vmul.f32 %v265, 0.2
    %v305 = vmul.f32 %v180, 0.2
    %v306 = vmul.f32 %v182, 0.2
    %v307 = vmul.f32 %v269, 0.2
    %v308 = vmul.f32 %v271, 0.2
    %v309 = vmul.f32 %v186, 0.2
    %v310 = vmul.f32 %v188, 0.2
    %v311 = vmul.f32 %v275, 0.2
    %v312 = vmul.f32 %v277, 0.2
    %v313 = vmul.f32 %v192, 0.2
    %v314 = vmul.f32 %v194, 0.2
    %v315 = vmul.f32 %v281, 0.2
    %v316 = vmul.f32 %v283, 0.2
    %v317 = vsel %vm285, %v174, %v301
    %v318 = vsel %vm286, %v176, %v302
    %v319 = vsel %vm287, %v263, %v303
    %v320 = vsel %vm288, %v265, %v304
    %v321 = vsel %vm289, %v180, %v305
    %v322 = vsel %vm290, %v182, %v306
    %v323 = vsel %vm291, %v269, %v307
    %v324 = vsel %vm292, %v271, %v308
    %v325 = vsel %vm293, %v186, %v309
    %v326 = vsel %vm294, %v188, %v310
    %v327 = vsel %vm295, %v275, %v311
    %v328 = vsel %vm296, %v277, %v312
    %v329 = vsel %vm297, %v192, %v313
    %v330 = vsel %vm298, %v194, %v314
    %v331 = vsel %vm299, %v281, %v315
    %v332 = vsel %vm300, %v283, %v316
    %v333 = vld [vmem:[%s4] sm:$0xff]
    %v334 = vld [vmem:[%s4 + $0x8] sm:$0xff]
    %v335 = vld [vmem:[%s5] sm:$0xff]
    %v336 = vld [vmem:[%s5 + $0x8] sm:$0xff]
    %338 = vset.pattern.permute.xlu0 0
    %339 = vperm.xlu0 %338, %v335
    %v340 = vpop.permute.xlu0 %339
    %343 = vset.pattern.permute.xlu0 0
    %344 = vperm.xlu0 %343, %v336
    %v345 = vpop.permute.xlu0 %344
    %v348 = vsel %vm94, %v333, 0
    %v351 = vsel %vm94, %v334, 0
    %353 = vmatprep.subr.mxu0 0.0
    %354 = vmatpush1.msra.mxu0 0.0
    %355 = vmatprep.subr.mxu0 0.0
    %356 = vmatpush1.msra.mxu0 0.0
    %357 = vmatprep.subr.mxu0 0.0
    %358 = vmatpush1.msra.mxu0 0.0
    %359 = vmatprep.subr.mxu0 0.0
    %360 = vmatpush1.msra.mxu0 0.0
    %361 = vmatprep.subr.mxu0 0.0
    %362 = vmatpush1.msra.mxu0 0.0
    %363 = vmatprep.subr.mxu0 0.0
    %364 = vmatpush1.msra.mxu0 0.0
    %365 = vmatprep.subr.mxu0 0.0
    %366 = vmatpush1.msra.mxu0 0.0
    %367 = vmatprep.subr.mxu0 0.0
    %368 = vmatpush1.msra.mxu0 0.0
    %369 = vmatprep.subr.mxu0 0.0
    %370 = vmatpush1.msra.mxu0 0.0
    %371 = vmatprep.subr.mxu0 0.0
    %372 = vmatpush1.msra.mxu0 0.0
    %373 = vmatprep.subr.mxu0 0.0
    %374 = vmatpush1.msra.mxu0 0.0
    %375 = vmatprep.subr.mxu0 0.0
    %376 = vmatpush1.msra.mxu0 0.0
    %377 = vmatprep.subr.mxu0 %v330
    %378 = vmatpush1.msra.mxu0 %v329
    %379 = vmatprep.subr.mxu0 %v326
    %380 = vmatpush1.msra.mxu0 %v325
    %381 = vmatprep.subr.mxu0 %v322
    %382 = vmatpush1.msra.mxu0 %v321
    %383 = vmatprep.subr.mxu0 %v318
    %384 = vmatpush1.msra.mxu0 %v317
    %385 = vmatprep.subr.mxu0 0.0
    %386 = vmatpush2.msra.mxu0 0.0
    %387 = vmatprep.subr.mxu0 0.0
    %388 = vmatpush2.msra.mxu0 0.0
    %389 = vmatprep.subr.mxu0 0.0
    %390 = vmatpush2.msra.mxu0 0.0
    %391 = vmatprep.subr.mxu0 0.0
    %392 = vmatpush2.msra.mxu0 0.0
    %393 = vmatprep.subr.mxu0 0.0
    %394 = vmatpush2.msra.mxu0 0.0
    %395 = vmatprep.subr.mxu0 0.0
    %396 = vmatpush2.msra.mxu0 0.0
    %397 = vmatprep.subr.mxu0 0.0
    %398 = vmatpush2.msra.mxu0 0.0
    %399 = vmatprep.subr.mxu0 0.0
    %400 = vmatpush2.msra.mxu0 0.0
    %401 = vmatprep.subr.mxu0 0.0
    %402 = vmatpush2.msra.mxu0 0.0
    %403 = vmatprep.subr.mxu0 0.0
    %404 = vmatpush2.msra.mxu0 0.0
    %405 = vmatprep.subr.mxu0 0.0
    %406 = vmatpush2.msra.mxu0 0.0
    %407 = vmatprep.subr.mxu0 0.0
    %408 = vmatpush2.msra.mxu0 0.0
    %409 = vmatprep.subr.mxu0 0.0
    %410 = vmatpush2.msra.mxu0 0.0
    %411 = vmatprep.subr.mxu0 0.0
    %412 = vmatpush2.msra.mxu0 0.0
    %413 = vmatprep.subr.mxu0 0.0
    %414 = vmatpush2.msra.mxu0 0.0
    %415 = vmatprep.subr.mxu0 0.0
    %416 = vmatpush2.msra.mxu0 0.0
    %417 = vmatprep.mubr.f32.mxu0 0.0
    %418 = vmatmul.mubr.f32.gmra.mxu0 %v348
    %v419 = vpop.f32.mrf.mxu0
    %v420 = vadd.f32 %v340, %v419
    %v421 = vpop.f32.mrf.mxu0
    %v422 = vadd.f32 %v340, %v421
    %423 = vmatprep.mubr.f32.mxu0 0.0
    %424 = vmatmul.mubr.f32.gmra.mxu0 %v351
    %v425 = vpop.f32.mrf.mxu0
    %v426 = vadd.f32 %v345, %v425
    %v427 = vpop.f32.mrf.mxu0
    %v428 = vadd.f32 %v345, %v427
    %429 = vdwg.mxu0
    %430 = vmatprep.subr.mxu0 0.0
    %431 = vmatpush1.msra.mxu0 0.0
    %432 = vmatprep.subr.mxu0 0.0
    %433 = vmatpush1.msra.mxu0 0.0
    %434 = vmatprep.subr.mxu0 0.0
    %435 = vmatpush1.msra.mxu0 0.0
    %436 = vmatprep.subr.mxu0 0.0
    %437 = vmatpush1.msra.mxu0 0.0
    %438 = vmatprep.subr.mxu0 0.0
    %439 = vmatpush1.msra.mxu0 0.0
    %440 = vmatprep.subr.mxu0 0.0
    %441 = vmatpush1.msra.mxu0 0.0
    %442 = vmatprep.subr.mxu0 0.0
    %443 = vmatpush1.msra.mxu0 0.0
    %444 = vmatprep.subr.mxu0 0.0
    %445 = vmatpush1.msra.mxu0 0.0
    %446 = vmatprep.subr.mxu0 0.0
    %447 = vmatpush1.msra.mxu0 0.0
    %448 = vmatprep.subr.mxu0 0.0
    %449 = vmatpush1.msra.mxu0 0.0
    %450 = vmatprep.subr.mxu0 0.0
    %451 = vmatpush1.msra.mxu0 0.0
    %452 = vmatprep.subr.mxu0 0.0
    %453 = vmatpush1.msra.mxu0 0.0
    %454 = vmatprep.subr.mxu0 %v332
    %455 = vmatpush1.msra.mxu0 %v331
    %456 = vmatprep.subr.mxu0 %v328
    %457 = vmatpush1.msra.mxu0 %v327
    %458 = vmatprep.subr.mxu0 %v324
    %459 = vmatpush1.msra.mxu0 %v323
    %460 = vmatprep.subr.mxu0 %v320
    %461 = vmatpush1.msra.mxu0 %v319
    %462 = vmatprep.subr.mxu0 0.0
    %463 = vmatpush2.msra.mxu0 0.0
    %464 = vmatprep.subr.mxu0 0.0
    %465 = vmatpush2.msra.mxu0 0.0
    %466 = vmatprep.subr.mxu0 0.0
    %467 = vmatpush2.msra.mxu0 0.0
    %468 = vmatprep.subr.mxu0 0.0
    %469 = vmatpush2.msra.mxu0 0.0
    %470 = vmatprep.subr.mxu0 0.0
    %471 = vmatpush2.msra.mxu0 0.0
    %472 = vmatprep.subr.mxu0 0.0
    %473 = vmatpush2.msra.mxu0 0.0
    %474 = vmatprep.subr.mxu0 0.0
    %475 = vmatpush2.msra.mxu0 0.0
    %476 = vmatprep.subr.mxu0 0.0
    %477 = vmatpush2.msra.mxu0 0.0
    %478 = vmatprep.subr.mxu0 0.0
    %479 = vmatpush2.msra.mxu0 0.0
    %480 = vmatprep.subr.mxu0 0.0
    %481 = vmatpush2.msra.mxu0 0.0
    %482 = vmatprep.subr.mxu0 0.0
    %483 = vmatpush2.msra.mxu0 0.0
    %484 = vmatprep.subr.mxu0 0.0
    %485 = vmatpush2.msra.mxu0 0.0
    %486 = vmatprep.subr.mxu0 0.0
    %487 = vmatpush2.msra.mxu0 0.0
    %488 = vmatprep.subr.mxu0 0.0
    %489 = vmatpush2.msra.mxu0 0.0
    %490 = vmatprep.subr.mxu0 0.0
    %491 = vmatpush2.msra.mxu0 0.0
    %492 = vmatprep.subr.mxu0 0.0
    %493 = vmatpush2.msra.mxu0 0.0
    %494 = vmatprep.mubr.f32.mxu0 0.0
    %495 = vmatmul.mubr.f32.gmra.mxu0 %v348
    %v496 = vpop.f32.mrf.mxu0
    %v497 = vadd.f32 %v340, %v496
    %v498 = vpop.f32.mrf.mxu0
    %v499 = vadd.f32 %v340, %v498
    %500 = vmatprep.mubr.f32.mxu0 0.0
    %501 = vmatmul.mubr.f32.gmra.mxu0 %v351
    %v502 = vpop.f32.mrf.mxu0
    %v503 = vadd.f32 %v345, %v502
    %v504 = vpop.f32.mrf.mxu0
    %v505 = vadd.f32 %v345, %v504
    %506 = vdwg.mxu0
    %vm507 = vcmp.gt.f32.partialorder %v420, 0.0
    %vm508 = vcmp.gt.f32.partialorder %v422, 0.0
    %vm509 = vcmp.gt.f32.partialorder %v497, 0.0
    %vm510 = vcmp.gt.f32.partialorder %v499, 0.0
    %vm511 = vcmp.gt.f32.partialorder %v426, 0.0
    %vm512 = vcmp.gt.f32.partialorder %v428, 0.0
    %vm513 = vcmp.gt.f32.partialorder %v503, 0.0
    %vm514 = vcmp.gt.f32.partialorder %v505, 0.0
    %v515 = vmul.f32 %v420, 0.2
    %v516 = vmul.f32 %v422, 0.2
    %v517 = vmul.f32 %v497, 0.2
    %v518 = vmul.f32 %v499, 0.2
    %v519 = vmul.f32 %v426, 0.2
    %v520 = vmul.f32 %v428, 0.2
    %v521 = vmul.f32 %v503, 0.2
    %v522 = vmul.f32 %v505, 0.2
    %v523 = vsel %vm507, %v420, %v515
    %v524 = vsel %vm508, %v422, %v516
    %v525 = vsel %vm509, %v497, %v517
    %v526 = vsel %vm510, %v499, %v518
    %v527 = vsel %vm511, %v426, %v519
    %v528 = vsel %vm512, %v428, %v520
    %v529 = vsel %vm513, %v503, %v521
    %v530 = vsel %vm514, %v505, %v522
    %v531 = vld [vmem:[%s6] sm:$0xf]
    %v532 = vld [vmem:[%s7] sm:$0xf]
    %534 = vset.pattern.permute.xlu0 0
    %535 = vperm.xlu0 %534, %v532
    %v536 = vpop.permute.xlu0 %535
    %vm538 = vcmask 130048
    %v540 = vsel %vm538, %v531, 0
    %542 = vmatprep.subr.mxu0 0.0
    %543 = vmatpush1.msra.mxu0 0.0
    %544 = vmatprep.subr.mxu0 0.0
    %545 = vmatpush1.msra.mxu0 0.0
    %546 = vmatprep.subr.mxu0 0.0
    %547 = vmatpush1.msra.mxu0 0.0
    %548 = vmatprep.subr.mxu0 0.0
    %549 = vmatpush1.msra.mxu0 0.0
    %550 = vmatprep.subr.mxu0 0.0
    %551 = vmatpush1.msra.mxu0 0.0
    %552 = vmatprep.subr.mxu0 0.0
    %553 = vmatpush1.msra.mxu0 0.0
    %554 = vmatprep.subr.mxu0 0.0
    %555 = vmatpush1.msra.mxu0 0.0
    %556 = vmatprep.subr.mxu0 0.0
    %557 = vmatpush1.msra.mxu0 0.0
    %558 = vmatprep.subr.mxu0 0.0
    %559 = vmatpush1.msra.mxu0 0.0
    %560 = vmatprep.subr.mxu0 0.0
    %561 = vmatpush1.msra.mxu0 0.0
    %562 = vmatprep.subr.mxu0 0.0
    %563 = vmatpush1.msra.mxu0 0.0
    %564 = vmatprep.subr.mxu0 0.0
    %565 = vmatpush1.msra.mxu0 0.0
    %566 = vmatprep.subr.mxu0 0.0
    %567 = vmatpush1.msra.mxu0 0.0
    %568 = vmatprep.subr.mxu0 0.0
    %569 = vmatpush1.msra.mxu0 0.0
    %570 = vmatprep.subr.mxu0 %v528
    %571 = vmatpush1.msra.mxu0 %v527
    %572 = vmatprep.subr.mxu0 %v524
    %573 = vmatpush1.msra.mxu0 %v523
    %574 = vmatprep.subr.mxu0 0.0
    %575 = vmatpush2.msra.mxu0 0.0
    %576 = vmatprep.subr.mxu0 0.0
    %577 = vmatpush2.msra.mxu0 0.0
    %578 = vmatprep.subr.mxu0 0.0
    %579 = vmatpush2.msra.mxu0 0.0
    %580 = vmatprep.subr.mxu0 0.0
    %581 = vmatpush2.msra.mxu0 0.0
    %582 = vmatprep.subr.mxu0 0.0
    %583 = vmatpush2.msra.mxu0 0.0
    %584 = vmatprep.subr.mxu0 0.0
    %585 = vmatpush2.msra.mxu0 0.0
    %586 = vmatprep.subr.mxu0 0.0
    %587 = vmatpush2.msra.mxu0 0.0
    %588 = vmatprep.subr.mxu0 0.0
    %589 = vmatpush2.msra.mxu0 0.0
    %590 = vmatprep.subr.mxu0 0.0
    %591 = vmatpush2.msra.mxu0 0.0
    %592 = vmatprep.subr.mxu0 0.0
    %593 = vmatpush2.msra.mxu0 0.0
    %594 = vmatprep.subr.mxu0 0.0
    %595 = vmatpush2.msra.mxu0 0.0
    %596 = vmatprep.subr.mxu0 0.0
    %597 = vmatpush2.msra.mxu0 0.0
    %598 = vmatprep.subr.mxu0 0.0
    %599 = vmatpush2.msra.mxu0 0.0
    %600 = vmatprep.subr.mxu0 0.0
    %601 = vmatpush2.msra.mxu0 0.0
    %602 = vmatprep.subr.mxu0 0.0
    %603 = vmatpush2.msra.mxu0 0.0
    %604 = vmatprep.subr.mxu0 0.0
    %605 = vmatpush2.msra.mxu0 0.0
    %606 = vmatprep.mubr.f32.mxu0 0.0
    %607 = vmatmul.mubr.f32.gmra.mxu0 %v540
    %v608 = vpop.f32.mrf.mxu0
    %v609 = vadd.f32 %v536, %v608
    %v610 = vpop.f32.mrf.mxu0
    %v611 = vadd.f32 %v536, %v610
    %612 = vdwg.mxu0
    %613 = vmatprep.subr.mxu0 0.0
    %614 = vmatpush1.msra.mxu0 0.0
    %615 = vmatprep.subr.mxu0 0.0
    %616 = vmatpush1.msra.mxu0 0.0
    %617 = vmatprep.subr.mxu0 0.0
    %618 = vmatpush1.msra.mxu0 0.0
    %619 = vmatprep.subr.mxu0 0.0
    %620 = vmatpush1.msra.mxu0 0.0
    %621 = vmatprep.subr.mxu0 0.0
    %622 = vmatpush1.msra.mxu0 0.0
    %623 = vmatprep.subr.mxu0 0.0
    %624 = vmatpush1.msra.mxu0 0.0
    %625 = vmatprep.subr.mxu0 0.0
    %626 = vmatpush1.msra.mxu0 0.0
    %627 = vmatprep.subr.mxu0 0.0
    %628 = vmatpush1.msra.mxu0 0.0
    %629 = vmatprep.subr.mxu0 0.0
    %630 = vmatpush1.msra.mxu0 0.0
    %631 = vmatprep.subr.mxu0 0.0
    %632 = vmatpush1.msra.mxu0 0.0
    %633 = vmatprep.subr.mxu0 0.0
    %634 = vmatpush1.msra.mxu0 0.0
    %635 = vmatprep.subr.mxu0 0.0
    %636 = vmatpush1.msra.mxu0 0.0
    %637 = vmatprep.subr.mxu0 0.0
    %638 = vmatpush1.msra.mxu0 0.0
    %639 = vmatprep.subr.mxu0 0.0
    %640 = vmatpush1.msra.mxu0 0.0
    %641 = vmatprep.subr.mxu0 %v530
    %642 = vmatpush1.msra.mxu0 %v529
    %643 = vmatprep.subr.mxu0 %v526
    %644 = vmatpush1.msra.mxu0 %v525
    %645 = vmatprep.subr.mxu0 0.0
    %646 = vmatpush2.msra.mxu0 0.0
    %647 = vmatprep.subr.mxu0 0.0
    %648 = vmatpush2.msra.mxu0 0.0
    %649 = vmatprep.subr.mxu0 0.0
    %650 = vmatpush2.msra.mxu0 0.0
    %651 = vmatprep.subr.mxu0 0.0
    %652 = vmatpush2.msra.mxu0 0.0
    %653 = vmatprep.subr.mxu0 0.0
    %654 = vmatpush2.msra.mxu0 0.0
    %655 = vmatprep.subr.mxu0 0.0
    %656 = vmatpush2.msra.mxu0 0.0
    %657 = vmatprep.subr.mxu0 0.0
    %658 = vmatpush2.msra.mxu0 0.0
    %659 = vmatprep.subr.mxu0 0.0
    %660 = vmatpush2.msra.mxu0 0.0
    %661 = vmatprep.subr.mxu0 0.0
    %662 = vmatpush2.msra.mxu0 0.0
    %663 = vmatprep.subr.mxu0 0.0
    %664 = vmatpush2.msra.mxu0 0.0
    %665 = vmatprep.subr.mxu0 0.0
    %666 = vmatpush2.msra.mxu0 0.0
    %667 = vmatprep.subr.mxu0 0.0
    %668 = vmatpush2.msra.mxu0 0.0
    %669 = vmatprep.subr.mxu0 0.0
    %670 = vmatpush2.msra.mxu0 0.0
    %671 = vmatprep.subr.mxu0 0.0
    %672 = vmatpush2.msra.mxu0 0.0
    %673 = vmatprep.subr.mxu0 0.0
    %674 = vmatpush2.msra.mxu0 0.0
    %675 = vmatprep.subr.mxu0 0.0
    %676 = vmatpush2.msra.mxu0 0.0
    %677 = vmatprep.mubr.f32.mxu0 0.0
    %678 = vmatmul.mubr.f32.gmra.mxu0 %v540
    %v679 = vpop.f32.mrf.mxu0
    %v680 = vadd.f32 %v536, %v679
    %v681 = vpop.f32.mrf.mxu0
    %v682 = vadd.f32 %v536, %v681
    %683 = vdwg.mxu0
    %v684 = vld [vmem:[%s1] sm:$0xff]
    %v686 = vcombine.low %v684, %v684
    %v688 = vunpack.c.l.s4 1983009808
    %v689 = vunpack.c.0.s8 %v688
    %v690 = vlaneseq
    %v691 = vshrl.u32 %v690, 7
    %v692 = vsub.s32 %v689, %v691
    %v693 = vrot.slane %v686, %v692
    %v695 = vunpack.c.l.s4 1983009808
    %v696 = vunpack.c.0.s8 %v695
    %v697 = vlaneseq
    %v698 = vshrl.u32 %v697, 7
    %v699 = vsub.s32 %v696, %v698
    %v700 = vrot.slane %v684, %v699
    %v701 = vcombine.high %v693, %v693
    %v702 = vcombine.high %v700, %v700
    %v707 = vmul.f32 %v609, %v693
    %v708 = vmul.f32 %v611, %v701
    %v709 = vmul.f32 %v680, %v700
    %v710 = vmul.f32 %v682, %v702
    %v715 = vrot.slane %v707, 2
    %v716 = vrot.slane %v708, 2
    %v717 = vrot.slane %v709, 2
    %v718 = vrot.slane %v710, 2
    %v723 = vadd.f32 %v609, %v715
    %v724 = vadd.f32 %v611, %v716
    %v725 = vadd.f32 %v680, %v717
    %v726 = vadd.f32 %v682, %v718
    %v727 = vld [vmem:[%s8] sm:$0xff]
    %v728 = vld [vmem:[%s8 + $0x8] sm:$0xff]
    %730 = vset.pattern.permute.xlu0 0
    %731 = vperm.xlu0 %730, %v727
    %v732 = vpop.permute.xlu0 %731
    %735 = vset.pattern.permute.xlu0 0
    %736 = vperm.xlu0 %735, %v728
    %v737 = vpop.permute.xlu0 %736
    %v739 = vlaneseq
    %v740 = vshrl.u32 %v739, 7
    %v741 = vsub.s32 0, %v740
    %v742 = vrot.slane %v723, %v741
    %v743 = vlaneseq
    %v744 = vshrl.u32 %v743, 7
    %v745 = vsub.s32 0, %v744
    %v746 = vrot.slane %v724, %v745
    %v747 = vlaneseq
    %v748 = vshrl.u32 %v747, 7
    %v749 = vsub.s32 0, %v748
    %v750 = vrot.slane %v725, %v749
    %v751 = vlaneseq
    %v752 = vshrl.u32 %v751, 7
    %v753 = vsub.s32 0, %v752
    %v754 = vrot.slane %v726, %v753
    %v755 = vmul.f32 %v732, %v742
    %v756 = vmul.f32 %v732, %v746
    %v757 = vmul.f32 %v732, %v750
    %v758 = vmul.f32 %v732, %v754
    %v759 = vmul.f32 %v737, %v742
    %v760 = vmul.f32 %v737, %v746
    %v761 = vmul.f32 %v737, %v750
    %v762 = vmul.f32 %v737, %v754
    %763 = vset.pattern.permute.xlu0 1
    %764 = vperm.xlu0 %763, %v727
    %v765 = vpop.permute.xlu0 %764
    %767 = vset.pattern.permute.xlu0 1
    %768 = vperm.xlu0 %767, %v728
    %v769 = vpop.permute.xlu0 %768
    %v771 = vlaneseq
    %v772 = vshrl.u32 %v771, 7
    %v773 = vsub.s32 1, %v772
    %v774 = vrot.slane %v723, %v773
    %v775 = vlaneseq
    %v776 = vshrl.u32 %v775, 7
    %v777 = vsub.s32 1, %v776
    %v778 = vrot.slane %v724, %v777
    %v779 = vlaneseq
    %v780 = vshrl.u32 %v779, 7
    %v781 = vsub.s32 1, %v780
    %v782 = vrot.slane %v725, %v781
    %v783 = vlaneseq
    %v784 = vshrl.u32 %v783, 7
    %v785 = vsub.s32 1, %v784
    %v786 = vrot.slane %v726, %v785
    %v787 = vmul.f32 %v765, %v774
    %v788 = vmul.f32 %v765, %v778
    %v789 = vmul.f32 %v765, %v782
    %v790 = vmul.f32 %v765, %v786
    %v791 = vmul.f32 %v769, %v774
    %v792 = vmul.f32 %v769, %v778
    %v793 = vmul.f32 %v769, %v782
    %v794 = vmul.f32 %v769, %v786
    %v795 = vadd.f32 %v755, %v787
    %v796 = vadd.f32 %v756, %v788
    %v797 = vadd.f32 %v757, %v789
    %v798 = vadd.f32 %v758, %v790
    %v799 = vadd.f32 %v759, %v791
    %v800 = vadd.f32 %v760, %v792
    %v801 = vadd.f32 %v761, %v793
    %v802 = vadd.f32 %v762, %v794
    %v803 = vld [vmem:[%s9] sm:$0xff]
    %v804 = vld [vmem:[%s9 + $0x8] sm:$0xff]
    %806 = vset.pattern.permute.xlu0 0
    %807 = vperm.xlu0 %806, %v803
    %v808 = vpop.permute.xlu0 %807
    %811 = vset.pattern.permute.xlu0 0
    %812 = vperm.xlu0 %811, %v804
    %v813 = vpop.permute.xlu0 %812
    %v815 = vadd.f32 %v795, %v808
    %v816 = vadd.f32 %v796, %v808
    %v817 = vadd.f32 %v797, %v808
    %v818 = vadd.f32 %v798, %v808
    %v819 = vadd.f32 %v799, %v813
    %v820 = vadd.f32 %v800, %v813
    %v821 = vadd.f32 %v801, %v813
    %v822 = vadd.f32 %v802, %v813
    %vm823 = vcmp.gt.f32.partialorder %v815, 0.0
    %vm824 = vcmp.gt.f32.partialorder %v816, 0.0
    %vm825 = vcmp.gt.f32.partialorder %v817, 0.0
    %vm826 = vcmp.gt.f32.partialorder %v818, 0.0
    %vm827 = vcmp.gt.f32.partialorder %v819, 0.0
    %vm828 = vcmp.gt.f32.partialorder %v820, 0.0
    %vm829 = vcmp.gt.f32.partialorder %v821, 0.0
    %vm830 = vcmp.gt.f32.partialorder %v822, 0.0
    %v831 = vmul.f32 %v815, 0.2
    %v832 = vmul.f32 %v816, 0.2
    %v833 = vmul.f32 %v817, 0.2
    %v834 = vmul.f32 %v818, 0.2
    %v835 = vmul.f32 %v819, 0.2
    %v836 = vmul.f32 %v820, 0.2
    %v837 = vmul.f32 %v821, 0.2
    %v838 = vmul.f32 %v822, 0.2
    %v839 = vsel %vm823, %v815, %v831
    %v840 = vsel %vm824, %v816, %v832
    %v841 = vsel %vm825, %v817, %v833
    %v842 = vsel %vm826, %v818, %v834
    %v843 = vsel %vm827, %v819, %v835
    %v844 = vsel %vm828, %v820, %v836
    %v845 = vsel %vm829, %v821, %v837
    %v846 = vsel %vm830, %v822, %v838
    %v847 = vld [vmem:[%s10] sm:$0xff]
    %v848 = vld [vmem:[%s10 + $0x8] sm:$0xff]
    %v849 = vld [vmem:[%s10 + $0x10] sm:$0xff]
    %v850 = vld [vmem:[%s10 + $0x18] sm:$0xff]
    %v851 = vld [vmem:[%s11] sm:$0xff]
    %v852 = vld [vmem:[%s11 + $0x8] sm:$0xff]
    %v853 = vld [vmem:[%s11 + $0x10] sm:$0xff]
    %v854 = vld [vmem:[%s11 + $0x18] sm:$0xff]
    %856 = vset.pattern.permute.xlu0 0
    %857 = vperm.xlu0 %856, %v851
    %v858 = vpop.permute.xlu0 %857
    %861 = vset.pattern.permute.xlu0 0
    %862 = vperm.xlu0 %861, %v852
    %v863 = vpop.permute.xlu0 %862
    %866 = vset.pattern.permute.xlu0 0
    %867 = vperm.xlu0 %866, %v853
    %v868 = vpop.permute.xlu0 %867
    %871 = vset.pattern.permute.xlu0 0
    %872 = vperm.xlu0 %871, %v854
    %v873 = vpop.permute.xlu0 %872
    %v876 = vsel %vm538, %v847, 0
    %v879 = vsel %vm538, %v848, 0
    %v882 = vsel %vm538, %v849, 0
    %v885 = vsel %vm538, %v850, 0
    %887 = vmatprep.subr.mxu0 0.0
    %888 = vmatpush1.msra.mxu0 0.0
    %889 = vmatprep.subr.mxu0 0.0
    %890 = vmatpush1.msra.mxu0 0.0
    %891 = vmatprep.subr.mxu0 0.0
    %892 = vmatpush1.msra.mxu0 0.0
    %893 = vmatprep.subr.mxu0 0.0
    %894 = vmatpush1.msra.mxu0 0.0
    %895 = vmatprep.subr.mxu0 0.0
    %896 = vmatpush1.msra.mxu0 0.0
    %897 = vmatprep.subr.mxu0 0.0
    %898 = vmatpush1.msra.mxu0 0.0
    %899 = vmatprep.subr.mxu0 0.0
    %900 = vmatpush1.msra.mxu0 0.0
    %901 = vmatprep.subr.mxu0 0.0
    %902 = vmatpush1.msra.mxu0 0.0
    %903 = vmatprep.subr.mxu0 0.0
    %904 = vmatpush1.msra.mxu0 0.0
    %905 = vmatprep.subr.mxu0 0.0
    %906 = vmatpush1.msra.mxu0 0.0
    %907 = vmatprep.subr.mxu0 0.0
    %908 = vmatpush1.msra.mxu0 0.0
    %909 = vmatprep.subr.mxu0 0.0
    %910 = vmatpush1.msra.mxu0 0.0
    %911 = vmatprep.subr.mxu0 0.0
    %912 = vmatpush1.msra.mxu0 0.0
    %913 = vmatprep.subr.mxu0 0.0
    %914 = vmatpush1.msra.mxu0 0.0
    %915 = vmatprep.subr.mxu0 %v844
    %916 = vmatpush1.msra.mxu0 %v843
    %917 = vmatprep.subr.mxu0 %v840
    %918 = vmatpush1.msra.mxu0 %v839
    %919 = vmatprep.subr.mxu0 0.0
    %920 = vmatpush2.msra.mxu0 0.0
    %921 = vmatprep.subr.mxu0 0.0
    %922 = vmatpush2.msra.mxu0 0.0
    %923 = vmatprep.subr.mxu0 0.0
    %924 = vmatpush2.msra.mxu0 0.0
    %925 = vmatprep.subr.mxu0 0.0
    %926 = vmatpush2.msra.mxu0 0.0
    %927 = vmatprep.subr.mxu0 0.0
    %928 = vmatpush2.msra.mxu0 0.0
    %929 = vmatprep.subr.mxu0 0.0
    %930 = vmatpush2.msra.mxu0 0.0
    %931 = vmatprep.subr.mxu0 0.0
    %932 = vmatpush2.msra.mxu0 0.0
    %933 = vmatprep.subr.mxu0 0.0
    %934 = vmatpush2.msra.mxu0 0.0
    %935 = vmatprep.subr.mxu0 0.0
    %936 = vmatpush2.msra.mxu0 0.0
    %937 = vmatprep.subr.mxu0 0.0
    %938 = vmatpush2.msra.mxu0 0.0
    %939 = vmatprep.subr.mxu0 0.0
    %940 = vmatpush2.msra.mxu0 0.0
    %941 = vmatprep.subr.mxu0 0.0
    %942 = vmatpush2.msra.mxu0 0.0
    %943 = vmatprep.subr.mxu0 0.0
    %944 = vmatpush2.msra.mxu0 0.0
    %945 = vmatprep.subr.mxu0 0.0
    %946 = vmatpush2.msra.mxu0 0.0
    %947 = vmatprep.subr.mxu0 0.0
    %948 = vmatpush2.msra.mxu0 0.0
    %949 = vmatprep.subr.mxu0 0.0
    %950 = vmatpush2.msra.mxu0 0.0
    %951 = vmatprep.mubr.f32.mxu0 0.0
    %952 = vmatmul.mubr.f32.gmra.mxu0 %v876
    %v953 = vpop.f32.mrf.mxu0
    %v954 = vadd.f32 %v858, %v953
    %v955 = vpop.f32.mrf.mxu0
    %v956 = vadd.f32 %v858, %v955
    %957 = vmatprep.mubr.f32.mxu0 0.0
    %958 = vmatmul.mubr.f32.gmra.mxu0 %v879
    %v959 = vpop.f32.mrf.mxu0
    %v960 = vadd.f32 %v863, %v959
    %v961 = vpop.f32.mrf.mxu0
    %v962 = vadd.f32 %v863, %v961
    %963 = vmatprep.mubr.f32.mxu0 0.0
    %964 = vmatmul.mubr.f32.gmra.mxu0 %v882
    %v965 = vpop.f32.mrf.mxu0
    %v966 = vadd.f32 %v868, %v965
    %v967 = vpop.f32.mrf.mxu0
    %v968 = vadd.f32 %v868, %v967
    %969 = vmatprep.mubr.f32.mxu0 0.0
    %970 = vmatmul.mubr.f32.gmra.mxu0 %v885
    %v971 = vpop.f32.mrf.mxu0
    %v972 = vadd.f32 %v873, %v971
    %v973 = vpop.f32.mrf.mxu0
    %v974 = vadd.f32 %v873, %v973
    %975 = vdwg.mxu0
    %976 = vmatprep.subr.mxu0 0.0
    %977 = vmatpush1.msra.mxu0 0.0
    %978 = vmatprep.subr.mxu0 0.0
    %979 = vmatpush1.msra.mxu0 0.0
    %980 = vmatprep.subr.mxu0 0.0
    %981 = vmatpush1.msra.mxu0 0.0
    %982 = vmatprep.subr.mxu0 0.0
    %983 = vmatpush1.msra.mxu0 0.0
    %984 = vmatprep.subr.mxu0 0.0
    %985 = vmatpush1.msra.mxu0 0.0
    %986 = vmatprep.subr.mxu0 0.0
    %987 = vmatpush1.msra.mxu0 0.0
    %988 = vmatprep.subr.mxu0 0.0
    %989 = vmatpush1.msra.mxu0 0.0
    %990 = vmatprep.subr.mxu0 0.0
    %991 = vmatpush1.msra.mxu0 0.0
    %992 = vmatprep.subr.mxu0 0.0
    %993 = vmatpush1.msra.mxu0 0.0
    %994 = vmatprep.subr.mxu0 0.0
    %995 = vmatpush1.msra.mxu0 0.0
    %996 = vmatprep.subr.mxu0 0.0
    %997 = vmatpush1.msra.mxu0 0.0
    %998 = vmatprep.subr.mxu0 0.0
    %999 = vmatpush1.msra.mxu0 0.0
    %1000 = vmatprep.subr.mxu0 0.0
    %1001 = vmatpush1.msra.mxu0 0.0
    %1002 = vmatprep.subr.mxu0 0.0
    %1003 = vmatpush1.msra.mxu0 0.0
    %1004 = vmatprep.subr.mxu0 %v846
    %1005 = vmatpush1.msra.mxu0 %v845
    %1006 = vmatprep.subr.mxu0 %v842
    %1007 = vmatpush1.msra.mxu0 %v841
    %1008 = vmatprep.subr.mxu0 0.0
    %1009 = vmatpush2.msra.mxu0 0.0
    %1010 = vmatprep.subr.mxu0 0.0
    %1011 = vmatpush2.msra.mxu0 0.0
    %1012 = vmatprep.subr.mxu0 0.0
    %1013 = vmatpush2.msra.mxu0 0.0
    %1014 = vmatprep.subr.mxu0 0.0
    %1015 = vmatpush2.msra.mxu0 0.0
    %1016 = vmatprep.subr.mxu0 0.0
    %1017 = vmatpush2.msra.mxu0 0.0
    %1018 = vmatprep.subr.mxu0 0.0
    %1019 = vmatpush2.msra.mxu0 0.0
    %1020 = vmatprep.subr.mxu0 0.0
    %1021 = vmatpush2.msra.mxu0 0.0
    %1022 = vmatprep.subr.mxu0 0.0
    %1023 = vmatpush2.msra.mxu0 0.0
    %1024 = vmatprep.subr.mxu0 0.0
    %1025 = vmatpush2.msra.mxu0 0.0
    %1026 = vmatprep.subr.mxu0 0.0
    %1027 = vmatpush2.msra.mxu0 0.0
    %1028 = vmatprep.subr.mxu0 0.0
    %1029 = vmatpush2.msra.mxu0 0.0
    %1030 = vmatprep.subr.mxu0 0.0
    %1031 = vmatpush2.msra.mxu0 0.0
    %1032 = vmatprep.subr.mxu0 0.0
    %1033 = vmatpush2.msra.mxu0 0.0
    %1034 = vmatprep.subr.mxu0 0.0
    %1035 = vmatpush2.msra.mxu0 0.0
    %1036 = vmatprep.subr.mxu0 0.0
    %1037 = vmatpush2.msra.mxu0 0.0
    %1038 = vmatprep.subr.mxu0 0.0
    %1039 = vmatpush2.msra.mxu0 0.0
    %1040 = vmatprep.mubr.f32.mxu0 0.0
    %1041 = vmatmul.mubr.f32.gmra.mxu0 %v876
    %v1042 = vpop.f32.mrf.mxu0
    %v1043 = vadd.f32 %v858, %v1042
    %v1044 = vpop.f32.mrf.mxu0
    %v1045 = vadd.f32 %v858, %v1044
    %1046 = vmatprep.mubr.f32.mxu0 0.0
    %1047 = vmatmul.mubr.f32.gmra.mxu0 %v879
    %v1048 = vpop.f32.mrf.mxu0
    %v1049 = vadd.f32 %v863, %v1048
    %v1050 = vpop.f32.mrf.mxu0
    %v1051 = vadd.f32 %v863, %v1050
    %1052 = vmatprep.mubr.f32.mxu0 0.0
    %1053 = vmatmul.mubr.f32.gmra.mxu0 %v882
    %v1054 = vpop.f32.mrf.mxu0
    %v1055 = vadd.f32 %v868, %v1054
    %v1056 = vpop.f32.mrf.mxu0
    %v1057 = vadd.f32 %v868, %v1056
    %1058 = vmatprep.mubr.f32.mxu0 0.0
    %1059 = vmatmul.mubr.f32.gmra.mxu0 %v885
    %v1060 = vpop.f32.mrf.mxu0
    %v1061 = vadd.f32 %v873, %v1060
    %v1062 = vpop.f32.mrf.mxu0
    %v1063 = vadd.f32 %v873, %v1062
    %1064 = vdwg.mxu0
    %vm1065 = vcmp.gt.f32.partialorder %v954, 0.0
    %vm1066 = vcmp.gt.f32.partialorder %v956, 0.0
    %vm1067 = vcmp.gt.f32.partialorder %v1043, 0.0
    %vm1068 = vcmp.gt.f32.partialorder %v1045, 0.0
    %vm1069 = vcmp.gt.f32.partialorder %v960, 0.0
    %vm1070 = vcmp.gt.f32.partialorder %v962, 0.0
    %vm1071 = vcmp.gt.f32.partialorder %v1049, 0.0
    %vm1072 = vcmp.gt.f32.partialorder %v1051, 0.0
    %vm1073 = vcmp.gt.f32.partialorder %v966, 0.0
    %vm1074 = vcmp.gt.f32.partialorder %v968, 0.0
    %vm1075 = vcmp.gt.f32.partialorder %v1055, 0.0
    %vm1076 = vcmp.gt.f32.partialorder %v1057, 0.0
    %vm1077 = vcmp.gt.f32.partialorder %v972, 0.0
    %vm1078 = vcmp.gt.f32.partialorder %v974, 0.0
    %vm1079 = vcmp.gt.f32.partialorder %v1061, 0.0
    %vm1080 = vcmp.gt.f32.partialorder %v1063, 0.0
    %v1081 = vmul.f32 %v954, 0.2
    %v1082 = vmul.f32 %v956, 0.2
    %v1083 = vmul.f32 %v1043, 0.2
    %v1084 = vmul.f32 %v1045, 0.2
    %v1085 = vmul.f32 %v960, 0.2
    %v1086 = vmul.f32 %v962, 0.2
    %v1087 = vmul.f32 %v1049, 0.2
    %v1088 = vmul.f32 %v1051, 0.2
    %v1089 = vmul.f32 %v966, 0.2
    %v1090 = vmul.f32 %v968, 0.2
    %v1091 = vmul.f32 %v1055, 0.2
    %v1092 = vmul.f32 %v1057, 0.2
    %v1093 = vmul.f32 %v972, 0.2
    %v1094 = vmul.f32 %v974, 0.2
    %v1095 = vmul.f32 %v1061, 0.2
    %v1096 = vmul.f32 %v1063, 0.2
    %v1097 = vsel %vm1065, %v954, %v1081
    %v1098 = vsel %vm1066, %v956, %v1082
    %v1099 = vsel %vm1067, %v1043, %v1083
    %v1100 = vsel %vm1068, %v1045, %v1084
    %v1101 = vsel %vm1069, %v960, %v1085
    %v1102 = vsel %vm1070, %v962, %v1086
    %v1103 = vsel %vm1071, %v1049, %v1087
    %v1104 = vsel %vm1072, %v1051, %v1088
    %v1105 = vsel %vm1073, %v966, %v1089
    %v1106 = vsel %vm1074, %v968, %v1090
    %v1107 = vsel %vm1075, %v1055, %v1091
    %v1108 = vsel %vm1076, %v1057, %v1092
    %v1109 = vsel %vm1077, %v972, %v1093
    %v1110 = vsel %vm1078, %v974, %v1094
    %v1111 = vsel %vm1079, %v1061, %v1095
    %v1112 = vsel %vm1080, %v1063, %v1096
    %v1113 = vld [vmem:[%s12] sm:$0xff]
    %v1114 = vld [vmem:[%s12 + $0x8] sm:$0xff]
    %v1115 = vld [vmem:[%s12 + $0x10] sm:$0xff]
    %v1116 = vld [vmem:[%s12 + $0x18] sm:$0xff]
    %v1117 = vld [vmem:[%s13] sm:$0xff]
    %v1118 = vld [vmem:[%s13 + $0x8] sm:$0xff]
    %v1119 = vld [vmem:[%s13 + $0x10] sm:$0xff]
    %v1120 = vld [vmem:[%s13 + $0x18] sm:$0xff]
    %1122 = vset.pattern.permute.xlu0 0
    %1123 = vperm.xlu0 %1122, %v1117
    %v1124 = vpop.permute.xlu0 %1123
    %1127 = vset.pattern.permute.xlu0 0
    %1128 = vperm.xlu0 %1127, %v1118
    %v1129 = vpop.permute.xlu0 %1128
    %1132 = vset.pattern.permute.xlu0 0
    %1133 = vperm.xlu0 %1132, %v1119
    %v1134 = vpop.permute.xlu0 %1133
    %1137 = vset.pattern.permute.xlu0 0
    %1138 = vperm.xlu0 %1137, %v1120
    %v1139 = vpop.permute.xlu0 %1138
    %v1142 = vsel %vm94, %v1113, 0
    %v1145 = vsel %vm94, %v1114, 0
    %v1148 = vsel %vm94, %v1115, 0
    %v1151 = vsel %vm94, %v1116, 0
    %1153 = vmatprep.subr.mxu0 0.0
    %1154 = vmatpush1.msra.mxu0 0.0
    %1155 = vmatprep.subr.mxu0 0.0
    %1156 = vmatpush1.msra.mxu0 0.0
    %1157 = vmatprep.subr.mxu0 0.0
    %1158 = vmatpush1.msra.mxu0 0.0
    %1159 = vmatprep.subr.mxu0 0.0
    %1160 = vmatpush1.msra.mxu0 0.0
    %1161 = vmatprep.subr.mxu0 0.0
    %1162 = vmatpush1.msra.mxu0 0.0
    %1163 = vmatprep.subr.mxu0 0.0
    %1164 = vmatpush1.msra.mxu0 0.0
    %1165 = vmatprep.subr.mxu0 0.0
    %1166 = vmatpush1.msra.mxu0 0.0
    %1167 = vmatprep.subr.mxu0 0.0
    %1168 = vmatpush1.msra.mxu0 0.0
    %1169 = vmatprep.subr.mxu0 0.0
    %1170 = vmatpush1.msra.mxu0 0.0
    %1171 = vmatprep.subr.mxu0 0.0
    %1172 = vmatpush1.msra.mxu0 0.0
    %1173 = vmatprep.subr.mxu0 0.0
    %1174 = vmatpush1.msra.mxu0 0.0
    %1175 = vmatprep.subr.mxu0 0.0
    %1176 = vmatpush1.msra.mxu0 0.0
    %1177 = vmatprep.subr.mxu0 %v1110
    %1178 = vmatpush1.msra.mxu0 %v1109
    %1179 = vmatprep.subr.mxu0 %v1106
    %1180 = vmatpush1.msra.mxu0 %v1105
    %1181 = vmatprep.subr.mxu0 %v1102
    %1182 = vmatpush1.msra.mxu0 %v1101
    %1183 = vmatprep.subr.mxu0 %v1098
    %1184 = vmatpush1.msra.mxu0 %v1097
    %1185 = vmatprep.subr.mxu0 0.0
    %1186 = vmatpush2.msra.mxu0 0.0
    %1187 = vmatprep.subr.mxu0 0.0
    %1188 = vmatpush2.msra.mxu0 0.0
    %1189 = vmatprep.subr.mxu0 0.0
    %1190 = vmatpush2.msra.mxu0 0.0
    %1191 = vmatprep.subr.mxu0 0.0
    %1192 = vmatpush2.msra.mxu0 0.0
    %1193 = vmatprep.subr.mxu0 0.0
    %1194 = vmatpush2.msra.mxu0 0.0
    %1195 = vmatprep.subr.mxu0 0.0
    %1196 = vmatpush2.msra.mxu0 0.0
    %1197 = vmatprep.subr.mxu0 0.0
    %1198 = vmatpush2.msra.mxu0 0.0
    %1199 = vmatprep.subr.mxu0 0.0
    %1200 = vmatpush2.msra.mxu0 0.0
    %1201 = vmatprep.subr.mxu0 0.0
    %1202 = vmatpush2.msra.mxu0 0.0
    %1203 = vmatprep.subr.mxu0 0.0
    %1204 = vmatpush2.msra.mxu0 0.0
    %1205 = vmatprep.subr.mxu0 0.0
    %1206 = vmatpush2.msra.mxu0 0.0
    %1207 = vmatprep.subr.mxu0 0.0
    %1208 = vmatpush2.msra.mxu0 0.0
    %1209 = vmatprep.subr.mxu0 0.0
    %1210 = vmatpush2.msra.mxu0 0.0
    %1211 = vmatprep.subr.mxu0 0.0
    %1212 = vmatpush2.msra.mxu0 0.0
    %1213 = vmatprep.subr.mxu0 0.0
    %1214 = vmatpush2.msra.mxu0 0.0
    %1215 = vmatprep.subr.mxu0 0.0
    %1216 = vmatpush2.msra.mxu0 0.0
    %1217 = vmatprep.mubr.f32.mxu0 0.0
    %1218 = vmatmul.mubr.f32.gmra.mxu0 %v1142
    %v1219 = vpop.f32.mrf.mxu0
    %v1220 = vadd.f32 %v1124, %v1219
    %v1221 = vpop.f32.mrf.mxu0
    %v1222 = vadd.f32 %v1124, %v1221
    %1223 = vmatprep.mubr.f32.mxu0 0.0
    %1224 = vmatmul.mubr.f32.gmra.mxu0 %v1145
    %v1225 = vpop.f32.mrf.mxu0
    %v1226 = vadd.f32 %v1129, %v1225
    %v1227 = vpop.f32.mrf.mxu0
    %v1228 = vadd.f32 %v1129, %v1227
    %1229 = vmatprep.mubr.f32.mxu0 0.0
    %1230 = vmatmul.mubr.f32.gmra.mxu0 %v1148
    %v1231 = vpop.f32.mrf.mxu0
    %v1232 = vadd.f32 %v1134, %v1231
    %v1233 = vpop.f32.mrf.mxu0
    %v1234 = vadd.f32 %v1134, %v1233
    %1235 = vmatprep.mubr.f32.mxu0 0.0
    %1236 = vmatmul.mubr.f32.gmra.mxu0 %v1151
    %v1237 = vpop.f32.mrf.mxu0
    %v1238 = vadd.f32 %v1139, %v1237
    %v1239 = vpop.f32.mrf.mxu0
    %v1240 = vadd.f32 %v1139, %v1239
    %1241 = vdwg.mxu0
    %1242 = vmatprep.subr.mxu0 0.0
    %1243 = vmatpush1.msra.mxu0 0.0
    %1244 = vmatprep.subr.mxu0 0.0
    %1245 = vmatpush1.msra.mxu0 0.0
    %1246 = vmatprep.subr.mxu0 0.0
    %1247 = vmatpush1.msra.mxu0 0.0
    %1248 = vmatprep.subr.mxu0 0.0
    %1249 = vmatpush1.msra.mxu0 0.0
    %1250 = vmatprep.subr.mxu0 0.0
    %1251 = vmatpush1.msra.mxu0 0.0
    %1252 = vmatprep.subr.mxu0 0.0
    %1253 = vmatpush1.msra.mxu0 0.0
    %1254 = vmatprep.subr.mxu0 0.0
    %1255 = vmatpush1.msra.mxu0 0.0
    %1256 = vmatprep.subr.mxu0 0.0
    %1257 = vmatpush1.msra.mxu0 0.0
    %1258 = vmatprep.subr.mxu0 0.0
    %1259 = vmatpush1.msra.mxu0 0.0
    %1260 = vmatprep.subr.mxu0 0.0
    %1261 = vmatpush1.msra.mxu0 0.0
    %1262 = vmatprep.subr.mxu0 0.0
    %1263 = vmatpush1.msra.mxu0 0.0
    %1264 = vmatprep.subr.mxu0 0.0
    %1265 = vmatpush1.msra.mxu0 0.0
    %1266 = vmatprep.subr.mxu0 %v1112
    %1267 = vmatpush1.msra.mxu0 %v1111
    %1268 = vmatprep.subr.mxu0 %v1108
    %1269 = vmatpush1.msra.mxu0 %v1107
    %1270 = vmatprep.subr.mxu0 %v1104
    %1271 = vmatpush1.msra.mxu0 %v1103
    %1272 = vmatprep.subr.mxu0 %v1100
    %1273 = vmatpush1.msra.mxu0 %v1099
    %1274 = vmatprep.subr.mxu0 0.0
    %1275 = vmatpush2.msra.mxu0 0.0
    %1276 = vmatprep.subr.mxu0 0.0
    %1277 = vmatpush2.msra.mxu0 0.0
    %1278 = vmatprep.subr.mxu0 0.0
    %1279 = vmatpush2.msra.mxu0 0.0
    %1280 = vmatprep.subr.mxu0 0.0
    %1281 = vmatpush2.msra.mxu0 0.0
    %1282 = vmatprep.subr.mxu0 0.0
    %1283 = vmatpush2.msra.mxu0 0.0
    %1284 = vmatprep.subr.mxu0 0.0
    %1285 = vmatpush2.msra.mxu0 0.0
    %1286 = vmatprep.subr.mxu0 0.0
    %1287 = vmatpush2.msra.mxu0 0.0
    %1288 = vmatprep.subr.mxu0 0.0
    %1289 = vmatpush2.msra.mxu0 0.0
    %1290 = vmatprep.subr.mxu0 0.0
    %1291 = vmatpush2.msra.mxu0 0.0
    %1292 = vmatprep.subr.mxu0 0.0
    %1293 = vmatpush2.msra.mxu0 0.0
    %1294 = vmatprep.subr.mxu0 0.0
    %1295 = vmatpush2.msra.mxu0 0.0
    %1296 = vmatprep.subr.mxu0 0.0
    %1297 = vmatpush2.msra.mxu0 0.0
    %1298 = vmatprep.subr.mxu0 0.0
    %1299 = vmatpush2.msra.mxu0 0.0
    %1300 = vmatprep.subr.mxu0 0.0
    %1301 = vmatpush2.msra.mxu0 0.0
    %1302 = vmatprep.subr.mxu0 0.0
    %1303 = vmatpush2.msra.mxu0 0.0
    %1304 = vmatprep.subr.mxu0 0.0
    %1305 = vmatpush2.msra.mxu0 0.0
    %1306 = vmatprep.mubr.f32.mxu0 0.0
    %1307 = vmatmul.mubr.f32.gmra.mxu0 %v1142
    %v1308 = vpop.f32.mrf.mxu0
    %v1309 = vadd.f32 %v1124, %v1308
    %v1310 = vpop.f32.mrf.mxu0
    %v1311 = vadd.f32 %v1124, %v1310
    %1312 = vmatprep.mubr.f32.mxu0 0.0
    %1313 = vmatmul.mubr.f32.gmra.mxu0 %v1145
    %v1314 = vpop.f32.mrf.mxu0
    %v1315 = vadd.f32 %v1129, %v1314
    %v1316 = vpop.f32.mrf.mxu0
    %v1317 = vadd.f32 %v1129, %v1316
    %1318 = vmatprep.mubr.f32.mxu0 0.0
    %1319 = vmatmul.mubr.f32.gmra.mxu0 %v1148
    %v1320 = vpop.f32.mrf.mxu0
    %v1321 = vadd.f32 %v1134, %v1320
    %v1322 = vpop.f32.mrf.mxu0
    %v1323 = vadd.f32 %v1134, %v1322
    %1324 = vmatprep.mubr.f32.mxu0 0.0
    %1325 = vmatmul.mubr.f32.gmra.mxu0 %v1151
    %v1326 = vpop.f32.mrf.mxu0
    %v1327 = vadd.f32 %v1139, %v1326
    %v1328 = vpop.f32.mrf.mxu0
    %v1329 = vadd.f32 %v1139, %v1328
    %1330 = vdwg.mxu0
    %v1331 = vxor.u32 %v1220, 2147483648
    %v1332 = vxor.u32 %v1222, 2147483648
    %v1333 = vxor.u32 %v1309, 2147483648
    %v1334 = vxor.u32 %v1311, 2147483648
    %v1335 = vxor.u32 %v1226, 2147483648
    %v1336 = vxor.u32 %v1228, 2147483648
    %v1337 = vxor.u32 %v1315, 2147483648
    %v1338 = vxor.u32 %v1317, 2147483648
    %v1339 = vxor.u32 %v1232, 2147483648
    %v1340 = vxor.u32 %v1234, 2147483648
    %v1341 = vxor.u32 %v1321, 2147483648
    %v1342 = vxor.u32 %v1323, 2147483648
    %v1343 = vxor.u32 %v1238, 2147483648
    %v1344 = vxor.u32 %v1240, 2147483648
    %v1345 = vxor.u32 %v1327, 2147483648
    %v1346 = vxor.u32 %v1329, 2147483648
    %v1347 = vmul.f32 %v1331, 1.442695
    %v1348 = vpow.pop %v1347
    %v1349 = vmul.f32 %v1332, 1.442695
    %v1350 = vpow.pop %v1349
    %v1351 = vmul.f32 %v1333, 1.442695
    %v1352 = vpow.pop %v1351
    %v1353 = vmul.f32 %v1334, 1.442695
    %v1354 = vpow.pop %v1353
    %v1355 = vmul.f32 %v1335, 1.442695
    %v1356 = vpow.pop %v1355
    %v1357 = vmul.f32 %v1336, 1.442695
    %v1358 = vpow.pop %v1357
    %v1359 = vmul.f32 %v1337, 1.442695
    %v1360 = vpow.pop %v1359
    %v1361 = vmul.f32 %v1338, 1.442695
    %v1362 = vpow.pop %v1361
    %v1363 = vmul.f32 %v1339, 1.442695
    %v1364 = vpow.pop %v1363
    %v1365 = vmul.f32 %v1340, 1.442695
    %v1366 = vpow.pop %v1365
    %v1367 = vmul.f32 %v1341, 1.442695
    %v1368 = vpow.pop %v1367
    %v1369 = vmul.f32 %v1342, 1.442695
    %v1370 = vpow.pop %v1369
    %v1371 = vmul.f32 %v1343, 1.442695
    %v1372 = vpow.pop %v1371
    %v1373 = vmul.f32 %v1344, 1.442695
    %v1374 = vpow.pop %v1373
    %v1375 = vmul.f32 %v1345, 1.442695
    %v1376 = vpow.pop %v1375
    %v1377 = vmul.f32 %v1346, 1.442695
    %v1378 = vpow.pop %v1377
    %v1379 = vadd.f32 %v1348, 1.0
    %v1380 = vadd.f32 %v1350, 1.0
    %v1381 = vadd.f32 %v1352, 1.0
    %v1382 = vadd.f32 %v1354, 1.0
    %v1383 = vadd.f32 %v1356, 1.0
    %v1384 = vadd.f32 %v1358, 1.0
    %v1385 = vadd.f32 %v1360, 1.0
    %v1386 = vadd.f32 %v1362, 1.0
    %v1387 = vadd.f32 %v1364, 1.0
    %v1388 = vadd.f32 %v1366, 1.0
    %v1389 = vadd.f32 %v1368, 1.0
    %v1390 = vadd.f32 %v1370, 1.0
    %v1391 = vadd.f32 %v1372, 1.0
    %v1392 = vadd.f32 %v1374, 1.0
    %v1393 = vadd.f32 %v1376, 1.0
    %v1394 = vadd.f32 %v1378, 1.0
    %v1395 = vrcp.pop %v1379
    %v1396 = vmul.f32 1.0, %v1395
    %v1397 = vrcp.pop %v1380
    %v1398 = vmul.f32 1.0, %v1397
    %v1399 = vrcp.pop %v1381
    %v1400 = vmul.f32 1.0, %v1399
    %v1401 = vrcp.pop %v1382
    %v1402 = vmul.f32 1.0, %v1401
    %v1403 = vrcp.pop %v1383
    %v1404 = vmul.f32 1.0, %v1403
    %v1405 = vrcp.pop %v1384
    %v1406 = vmul.f32 1.0, %v1405
    %v1407 = vrcp.pop %v1385
    %v1408 = vmul.f32 1.0, %v1407
    %v1409 = vrcp.pop %v1386
    %v1410 = vmul.f32 1.0, %v1409
    %v1411 = vrcp.pop %v1387
    %v1412 = vmul.f32 1.0, %v1411
    %v1413 = vrcp.pop %v1388
    %v1414 = vmul.f32 1.0, %v1413
    %v1415 = vrcp.pop %v1389
    %v1416 = vmul.f32 1.0, %v1415
    %v1417 = vrcp.pop %v1390
    %v1418 = vmul.f32 1.0, %v1417
    %v1419 = vrcp.pop %v1391
    %v1420 = vmul.f32 1.0, %v1419
    %v1421 = vrcp.pop %v1392
    %v1422 = vmul.f32 1.0, %v1421
    %v1423 = vrcp.pop %v1393
    %v1424 = vmul.f32 1.0, %v1423
    %v1425 = vrcp.pop %v1394
    %v1426 = vmul.f32 1.0, %v1425
    %1427 = vst [vmem:[#allocation2] sm:$0xff] %v1396
    %1428 = vst [vmem:[#allocation2 + $0x8] sm:$0xff] %v1398
    %1429 = vst [vmem:[#allocation2 + $0x10] sm:$0xff] %v1400
    %1430 = vst [vmem:[#allocation2 + $0x18] sm:$0xff] %v1402
    %1431 = vst [vmem:[#allocation2 + $0x20] sm:$0xff] %v1404
    %1432 = vst [vmem:[#allocation2 + $0x28] sm:$0xff] %v1406
    %1433 = vst [vmem:[#allocation2 + $0x30] sm:$0xff] %v1408
    %1434 = vst [vmem:[#allocation2 + $0x38] sm:$0xff] %v1410
    %1435 = vst [vmem:[#allocation2 + $0x40] sm:$0xff] %v1412
    %1436 = vst [vmem:[#allocation2 + $0x48] sm:$0xff] %v1414
    %1437 = vst [vmem:[#allocation2 + $0x50] sm:$0xff] %v1416
    %1438 = vst [vmem:[#allocation2 + $0x58] sm:$0xff] %v1418
    %1439 = vst [vmem:[#allocation2 + $0x60] sm:$0xff] %v1420
    %1440 = vst [vmem:[#allocation2 + $0x68] sm:$0xff] %v1422
    %1441 = vst [vmem:[#allocation2 + $0x70] sm:$0xff] %v1424
    %1442 = vst [vmem:[#allocation2 + $0x78] sm:$0xff] %v1426
    %v1447 = vcombine.low %v609, %v611
    %v1448 = vcombine.low %v680, %v682
    %1451 = vst [vmem:[%s15] sm:$0xff] %v1447
    %1452 = vst [vmem:[%s15 + $0x8] sm:$0xff] %v1448
    // Predicated region
    $region58: #{_vae_forward_impl.1} parent=1 // pred_check
      _
    $region59: #{_vae_forward_impl.1} parent=1 // pred_check_branch
      %1454 = sbr.rel (0) target = $region61
    $region60: #{_vae_forward_impl.1} parent=1 // pred_region
      %s1456 = ssub.s32 2048, 2048
      %1457 = vsyncadd [#allocation3], %s1456
      %s1458 = sshll.u32 [#allocation2], 4
      %s1459 = int_to_ptr.vmem [resolvable:$true] %s1458
      %1464 = dma.vmem_to_hbm [thread:$0]  %s1459, 2048, %s14, [#allocation3], 512, 512, 32
    $region61: #{_vae_forward_impl.1} parent=1 // pred_fallthru
      _
    // Predicated region
    $region62: #{_vae_forward_impl.1} parent=1 // pred_check
      _
    $region63: #{_vae_forward_impl.1} parent=1 // pred_check_branch
      %1466 = sbr.rel (0) target = $region65
    $region64: #{_vae_forward_impl.1} parent=1 // pred_region
      _
    $region65: #{_vae_forward_impl.1} parent=1 // pred_fallthru
      _
    // Predicated region
    $region66: #{_vae_forward_impl.1} parent=1 // pred_check
      _
    $region67: #{_vae_forward_impl.1} parent=1 // pred_check_branch
      %1468 = sbr.rel (0) target = $region69
    $region68: #{_vae_forward_impl.1} parent=1 // pred_region
      %1469 = dma.done [#allocation3], 2048
    $region69: #{_vae_forward_impl.1} parent=1 // pred_fallthru
      _
    // Predicated region
    $region70: #{_vae_forward_impl.1} parent=1 // pred_check
      _
    $region71: #{_vae_forward_impl.1} parent=1 // pred_check_branch
      %1471 = sbr.rel (0) target = $region73
    $region72: #{_vae_forward_impl.1} parent=1 // pred_region
      _
    $region73: #{_vae_forward_impl.1} parent=1 // pred_fallthru
      _
    %1472 = vsyncpa [#allocation3], 1

</llo_original>
